<compile_context>
chip_gen: v6e
topology: v6e:2x2x1
jax: 0.10.0
libtpu: 0.0.40
codegen_flags: <defaults>
</compile_context>

<pallas_src>
import jax
import jax.numpy as jnp
from jax.experimental import pallas as pl
from jax.experimental.pallas import tpu as pltpu


def _band_weight_evenodd(w_hwio, W):
    """Expand a (3,3,Cin,Cout) conv weight into 3 width-banded matrices whose
    output columns are grouped by horizontal-pool parity.

    Returns band of shape (3, (W+2)*Cin, W*Cout) with
        band[ky, xp*Cin + c, par*(Wo*Cout) + xo*Cout + o]
            = w[ky, xp - (2*xo + par), c, o]   if 0 <= xp - (2*xo + par) <= 2
              0                                otherwise
    so that, on the zero-padded row-major (xp, c) lane layout,
        conv_row(h) = sum_ky  P[h+ky, :] @ band[ky]
    reproduces Conv2d(3x3, stride=1, padding=1), with the first Wo*Cout output
    lanes holding the EVEN conv output columns and the last Wo*Cout the ODD
    ones.  Pure XLA glue, runs once outside the kernel.
    """
    Kh, Kw, Cin, Cout = w_hwio.shape
    Wo = W // 2
    Wp = W + 2
    wf = w_hwio.astype(jnp.float32)
    band = jnp.zeros((Kh, Wp, Cin, 2, Wo, Cout), jnp.float32)
    for par in range(2):
        for xo in range(Wo):
            x = 2 * xo + par
            for kx in range(Kw):
                band = band.at[:, x + kx, :, par, xo, :].set(wf[:, kx, :, :])
    return band.reshape(Kh, Wp * Cin, 2 * Wo * Cout)


def _make_encoder_kernel(dims, Nb):
    """dims: list of static per-layer (H, W, Cin, Cout) pre-pool shapes."""
    n_layers = len(dims)

    def kernel(*refs):
        x_ref = refs[0]
        o_ref = refs[1 + 2 * n_layers]
        tmp = refs[2 + 2 * n_layers]
        pad_refs = refs[3 + 2 * n_layers:]

        # Zero only the padding borders; the interiors are fully rewritten
        # every grid step.  Done per-step (not program_id==0-gated) so it is
        # correct even when the parallel grid axis is split across cores.
        for li, (H, W, Ci, Co) in enumerate(dims):
            pad = pad_refs[li]
            rows = Nb * (H + 2)
            zcol = jnp.zeros((rows, Ci), jnp.float32)
            pad[:, 0:Ci] = zcol
            pad[:, (W + 1) * Ci:(W + 2) * Ci] = zcol
            zrow = jnp.zeros((1, (W + 2) * Ci), jnp.float32)
            for n in range(Nb):
                pad[pl.ds(n * (H + 2), 1), :] = zrow
                pad[pl.ds(n * (H + 2) + H + 1, 1), :] = zrow

        # Stage this step's Nb images into the interior of layer 1's planes.
        H0, W0, Ci0, _ = dims[0]
        for n in range(Nb):
            pad_refs[0][pl.ds(n * (H0 + 2) + 1, H0),
                        Ci0:(W0 + 1) * Ci0] = x_ref[n]

        for li, (H, W, Ci, Co) in enumerate(dims):
            Ho, Wo = H // 2, W // 2
            half = Wo * Co
            pad = pad_refs[li]
            w_ref = refs[1 + 2 * li]       # (3, (W+2)*Ci, W*Co) banded weight
            bias = refs[2 + 2 * li][...]   # (1, Wo*Co) lane-tiled bias
            Mtot = Nb * (H + 2) - 2

            # Conv3x3(pad=1) over all Nb stacked images: 3 contiguous-row
            # banded matmuls, each with a lane-dense W*Co output whose two
            # halves are the even / odd conv output columns.
            acc = None
            for ky in range(3):
                lhs = pad[pl.ds(ky, Mtot), :]            # (Mtot, (W+2)*Ci)
                d = jnp.dot(lhs, w_ref[ky],
                            preferred_element_type=jnp.float32)
                acc = d if acc is None else acc + d      # (Mtot, W*Co)

            # Horizontal half of the 2x2 max-pool: one full-vreg maximum.
            tmp[0:Mtot, 0:half] = jnp.maximum(acc[:, 0:half],
                                              acc[:, half:2 * half])

            # Vertical half + bias + ReLU (exact: bias is tap-invariant and
            # max/ReLU are monotone), one lane-dense store per image.
            bias_rows = jnp.broadcast_to(bias, (Ho, half))
            last = (li + 1 == n_layers)
            for n in range(Nb):
                base = n * (H + 2)
                ev = tmp[pl.ds(base, Ho, stride=2), 0:half]
                od = tmp[pl.ds(base + 1, Ho, stride=2), 0:half]
                blk = jnp.maximum(jnp.maximum(ev, od) + bias_rows, 0.0)
                if last:
                    o_ref[n, 0:Ho, :] = blk
                else:
                    pad_refs[li + 1][pl.ds(n * (Ho + 2) + 1, Ho),
                                     Co:(Wo + 1) * Co] = blk

    return kernel


def cnn_encoder_forward(x_nchw, params, *, batch_block=8):
    """Pallas TPU implementation of CNN_Encoder.forward.  NCHW in / NCHW out."""
    N, Cin, H, W = x_nchw.shape
    Nb = min(N, batch_block)
    assert N % Nb == 0, "batch must be divisible by the per-step image block"

    # Static per-layer (pre-pool) shapes.
    dims = []
    h, w, ci = H, W, Cin
    for (w_hwio, _b) in params:
        kh, kw, wci, co = w_hwio.shape
        assert (kh, kw) == (3, 3) and wci == ci
        assert h % 2 == 0 and w % 2 == 0, "even spatial dims required (floor-mode pool)"
        dims.append((h, w, ci, co))
        h, w, ci = h // 2, w // 2, co
    Hf, Wf, Cf = h, w, ci                      # final output dims

    # Banded even|odd weights and lane-tiled biases (layout plumbing, once,
    # outside the kernel).
    wb = []
    for (w_hwio, b), (_hl, wl, _cil, col) in zip(params, dims):
        wb.append(_band_weight_evenodd(w_hwio, wl))
        wb.append(jnp.tile(b.astype(jnp.float32), wl // 2).reshape(
            1, (wl // 2) * col))

    # NCHW -> (N, H, W*Cin): rows = h, lanes = (x, c) with c minor.
    x_rows = jnp.transpose(x_nchw, (0, 2, 3, 1)).reshape(
        N, H, W * Cin).astype(jnp.float32)

    in_specs = [pl.BlockSpec((Nb, H, W * Cin), lambda g: (g, 0, 0))]
    for (_hl, wl, cil, col) in dims:
        in_specs.append(pl.BlockSpec((3, (wl + 2) * cil, wl * col),
                                     lambda g: (0, 0, 0)))
        in_specs.append(pl.BlockSpec((1, (wl // 2) * col), lambda g: (0, 0)))

    max_m = max(Nb * (hl + 2) - 2 for (hl, _wl, _cil, _col) in dims)
    max_half = max((wl // 2) * col for (_hl, wl, _cil, col) in dims)

    scratch_shapes = [pltpu.VMEM((max_m, max_half), jnp.float32)]
    scratch_shapes += [pltpu.VMEM((Nb * (hl + 2), (wl + 2) * cil), jnp.float32)
                       for (hl, wl, cil, _col) in dims]

    out = pl.pallas_call(
        _make_encoder_kernel(dims, Nb),
        out_shape=jax.ShapeDtypeStruct((N, Hf, Wf * Cf), jnp.float32),
        grid=(N // Nb,),
        in_specs=in_specs,
        out_specs=pl.BlockSpec((Nb, Hf, Wf * Cf), lambda g: (g, 0, 0)),
        scratch_shapes=scratch_shapes,
        compiler_params=pltpu.CompilerParams(
            dimension_semantics=("parallel",)),
    )(x_rows, *wb)

    # (N, Hf, Wf*Cf) with lanes = (x, c)  ->  NCHW
    return jnp.transpose(out.reshape(N, Hf, Wf, Cf), (0, 3, 1, 2))


def init_params(key):
    # conv1: 1->16, conv2: 16->32, conv3: 32->64, all 3x3 (HWIO layout here)
    shapes = [(3, 3, 1, 16), (3, 3, 16, 32), (3, 3, 32, 64)]
    params = []
    for i, s in enumerate(shapes):
        kw, kb = jax.random.split(jax.random.fold_in(key, i))
        w = 0.1 * jax.random.normal(kw, s, dtype=jnp.float32)
        b = 0.1 * jax.random.normal(kb, (s[-1],), dtype=jnp.float32)
        params.append((w, b))
    return params


def reference_forward(x_nchw, params):
    """Pure-JAX reference matching F.conv2d / relu / max_pool2d semantics."""
    y = x_nchw
    for (w_hwio, b) in params:
        w_oihw = jnp.transpose(w_hwio, (3, 2, 0, 1))
        y = jax.lax.conv_general_dilated(
            y, w_oihw, window_strides=(1, 1), padding=((1, 1), (1, 1)),
            dimension_numbers=("NCHW", "OIHW", "NCHW"),
            precision=jax.lax.Precision.HIGHEST)
        y = jnp.maximum(y + b.reshape(1, -1, 1, 1), 0.0)
        y = jax.lax.reduce_window(
            y, -jnp.inf, jax.lax.max,
            window_dimensions=(1, 1, 2, 2), window_strides=(1, 1, 2, 2),
            padding="VALID")
    return y


if __name__ == "__main__":
    key = jax.random.PRNGKey(0)
    kx, kp = jax.random.split(key)
    x = jax.random.normal(kx, (2, 1, 16, 16), dtype=jnp.float32)  # NCHW, 1 channel
    params = init_params(kp)

    fwd = jax.jit(cnn_encoder_forward)
    out = jax.block_until_ready(fwd(x, params))
    assert out.shape == (2, 64, 2, 2), out.shape

    ref = jax.block_until_ready(reference_forward(x, params))
    assert jnp.allclose(out, ref, atol=1e-4, rtol=1e-4), float(
        jnp.max(jnp.abs(out - ref)))

    print("KERNEL_OK")
</pallas_src>

<mosaic_0001>
module attributes {stable_mosaic.version = 11 : i64} {
  func.func @kernel(%arg0: i32, %arg1: memref<2x16x16xf32, #tpu.memory_space<vmem>>, %arg2: memref<3x18x256xf32, #tpu.memory_space<vmem>>, %arg3: memref<1x128xf32, #tpu.memory_space<vmem>>, %arg4: memref<3x160x256xf32, #tpu.memory_space<vmem>>, %arg5: memref<1x128xf32, #tpu.memory_space<vmem>>, %arg6: memref<3x192x256xf32, #tpu.memory_space<vmem>>, %arg7: memref<1x128xf32, #tpu.memory_space<vmem>>, %arg8: memref<2x2x128xf32, #tpu.memory_space<vmem>>, %arg9: memref<34x128xf32, #tpu.memory_space<vmem>>, %arg10: memref<36x18xf32, #tpu.memory_space<vmem>>, %arg11: memref<20x160xf32, #tpu.memory_space<vmem>>, %arg12: memref<12x192xf32, #tpu.memory_space<vmem>>) attributes {dimension_semantics = [#tpu.dimension_semantics<parallel>], iteration_bounds = array<i64: 1>, scalar_prefetch = 0 : i64, scratch_operands = 4 : i64, tpu.core_type = #tpu.core_type<tc>, window_params = [{transform_indices = @transform_0, window_bounds = array<i64: 2, 16, 16>}, {pipeline_mode = #tpu.pipeline_mode<synchronous>, transform_indices = @transform_1, window_bounds = array<i64: 3, 18, 256>}, {pipeline_mode = #tpu.pipeline_mode<synchronous>, transform_indices = @transform_2, window_bounds = array<i64: 1, 128>}, {pipeline_mode = #tpu.pipeline_mode<synchronous>, transform_indices = @transform_3, window_bounds = array<i64: 3, 160, 256>}, {pipeline_mode = #tpu.pipeline_mode<synchronous>, transform_indices = @transform_4, window_bounds = array<i64: 1, 128>}, {pipeline_mode = #tpu.pipeline_mode<synchronous>, transform_indices = @transform_5, window_bounds = array<i64: 3, 192, 256>}, {pipeline_mode = #tpu.pipeline_mode<synchronous>, transform_indices = @transform_6, window_bounds = array<i64: 1, 128>}, {transform_indices = @transform_7, window_bounds = array<i64: 2, 2, 128>}]} {
    %cst = arith.constant 0.000000e+00 : f32
    %0 = vector.broadcast %cst : f32 to vector<36x1xf32>
    %c0 = arith.constant 0 : index
    %c0_0 = arith.constant 0 : index
    %1 = vector.load %arg10[%c0, %c0_0] : memref<36x18xf32, #tpu.memory_space<vmem>>, vector<36x1xf32>
    tpu.vector_store %arg10[%c0, %c0_0], %0 {strides = array<i32>} : memref<36x18xf32, #tpu.memory_space<vmem>>, vector<36x1xf32>,
    %c0_1 = arith.constant 0 : index
    %c17 = arith.constant 17 : index
    %2 = vector.load %arg10[%c0_1, %c17] : memref<36x18xf32, #tpu.memory_space<vmem>>, vector<36x1xf32>
    tpu.vector_store %arg10[%c0_1, %c17], %0 {strides = array<i32>} : memref<36x18xf32, #tpu.memory_space<vmem>>, vector<36x1xf32>,
    %cst_2 = arith.constant 0.000000e+00 : f32
    %3 = vector.broadcast %cst_2 : f32 to vector<1x18xf32>
    %c0_3 = arith.constant 0 : index
    %c0_4 = arith.constant 0 : index
    %4 = vector.load %arg10[%c0_3, %c0_4] : memref<36x18xf32, #tpu.memory_space<vmem>>, vector<1x18xf32>
    tpu.vector_store %arg10[%c0_3, %c0_4], %3 {strides = array<i32>} : memref<36x18xf32, #tpu.memory_space<vmem>>, vector<1x18xf32>,
    %c17_5 = arith.constant 17 : index
    %c0_6 = arith.constant 0 : index
    %5 = vector.load %arg10[%c17_5, %c0_6] : memref<36x18xf32, #tpu.memory_space<vmem>>, vector<1x18xf32>
    tpu.vector_store %arg10[%c17_5, %c0_6], %3 {strides = array<i32>} : memref<36x18xf32, #tpu.memory_space<vmem>>, vector<1x18xf32>,
    %c18 = arith.constant 18 : index
    %c0_7 = arith.constant 0 : index
    %6 = vector.load %arg10[%c18, %c0_7] : memref<36x18xf32, #tpu.memory_space<vmem>>, vector<1x18xf32>
    tpu.vector_store %arg10[%c18, %c0_7], %3 {strides = array<i32>} : memref<36x18xf32, #tpu.memory_space<vmem>>, vector<1x18xf32>,
    %c35 = arith.constant 35 : index
    %c0_8 = arith.constant 0 : index
    %7 = vector.load %arg10[%c35, %c0_8] : memref<36x18xf32, #tpu.memory_space<vmem>>, vector<1x18xf32>
    tpu.vector_store %arg10[%c35, %c0_8], %3 {strides = array<i32>} : memref<36x18xf32, #tpu.memory_space<vmem>>, vector<1x18xf32>,
    %cst_9 = arith.constant 0.000000e+00 : f32
    %8 = vector.broadcast %cst_9 : f32 to vector<20x16xf32>
    %c0_10 = arith.constant 0 : index
    %c0_11 = arith.constant 0 : index
    %9 = vector.load %arg11[%c0_10, %c0_11] : memref<20x160xf32, #tpu.memory_space<vmem>>, vector<20x16xf32>
    tpu.vector_store %arg11[%c0_10, %c0_11], %8 {strides = array<i32>} : memref<20x160xf32, #tpu.memory_space<vmem>>, vector<20x16xf32>,
    %c0_12 = arith.constant 0 : index
    %c144 = arith.constant 144 : index
    %10 = vector.load %arg11[%c0_12, %c144] : memref<20x160xf32, #tpu.memory_space<vmem>>, vector<20x16xf32>
    tpu.vector_store %arg11[%c0_12, %c144], %8 {strides = array<i32>} : memref<20x160xf32, #tpu.memory_space<vmem>>, vector<20x16xf32>,
    %cst_13 = arith.constant 0.000000e+00 : f32
    %11 = vector.broadcast %cst_13 : f32 to vector<1x160xf32>
    %c0_14 = arith.constant 0 : index
    %c0_15 = arith.constant 0 : index
    %12 = vector.load %arg11[%c0_14, %c0_15] : memref<20x160xf32, #tpu.memory_space<vmem>>, vector<1x160xf32>
    tpu.vector_store %arg11[%c0_14, %c0_15], %11 {strides = array<i32>} : memref<20x160xf32, #tpu.memory_space<vmem>>, vector<1x160xf32>,
    %c9 = arith.constant 9 : index
    %c0_16 = arith.constant 0 : index
    %13 = vector.load %arg11[%c9, %c0_16] : memref<20x160xf32, #tpu.memory_space<vmem>>, vector<1x160xf32>
    tpu.vector_store %arg11[%c9, %c0_16], %11 {strides = array<i32>} : memref<20x160xf32, #tpu.memory_space<vmem>>, vector<1x160xf32>,
    %c10 = arith.constant 10 : index
    %c0_17 = arith.constant 0 : index
    %14 = vector.load %arg11[%c10, %c0_17] : memref<20x160xf32, #tpu.memory_space<vmem>>, vector<1x160xf32>
    tpu.vector_store %arg11[%c10, %c0_17], %11 {strides = array<i32>} : memref<20x160xf32, #tpu.memory_space<vmem>>, vector<1x160xf32>,
    %c19 = arith.constant 19 : index
    %c0_18 = arith.constant 0 : index
    %15 = vector.load %arg11[%c19, %c0_18] : memref<20x160xf32, #tpu.memory_space<vmem>>, vector<1x160xf32>
    tpu.vector_store %arg11[%c19, %c0_18], %11 {strides = array<i32>} : memref<20x160xf32, #tpu.memory_space<vmem>>, vector<1x160xf32>,
    %cst_19 = arith.constant 0.000000e+00 : f32
    %16 = vector.broadcast %cst_19 : f32 to vector<12x32xf32>
    %c0_20 = arith.constant 0 : index
    %c0_21 = arith.constant 0 : index
    %17 = vector.load %arg12[%c0_20, %c0_21] : memref<12x192xf32, #tpu.memory_space<vmem>>, vector<12x32xf32>
    tpu.vector_store %arg12[%c0_20, %c0_21], %16 {strides = array<i32>} : memref<12x192xf32, #tpu.memory_space<vmem>>, vector<12x32xf32>,
    %c0_22 = arith.constant 0 : index
    %c160 = arith.constant 160 : index
    %18 = vector.load %arg12[%c0_22, %c160] : memref<12x192xf32, #tpu.memory_space<vmem>>, vector<12x32xf32>
    tpu.vector_store %arg12[%c0_22, %c160], %16 {strides = array<i32>} : memref<12x192xf32, #tpu.memory_space<vmem>>, vector<12x32xf32>,
    %cst_23 = arith.constant 0.000000e+00 : f32
    %19 = vector.broadcast %cst_23 : f32 to vector<1x192xf32>
    %c0_24 = arith.constant 0 : index
    %c0_25 = arith.constant 0 : index
    %20 = vector.load %arg12[%c0_24, %c0_25] : memref<12x192xf32, #tpu.memory_space<vmem>>, vector<1x192xf32>
    tpu.vector_store %arg12[%c0_24, %c0_25], %19 {strides = array<i32>} : memref<12x192xf32, #tpu.memory_space<vmem>>, vector<1x192xf32>,
    %c5 = arith.constant 5 : index
    %c0_26 = arith.constant 0 : index
    %21 = vector.load %arg12[%c5, %c0_26] : memref<12x192xf32, #tpu.memory_space<vmem>>, vector<1x192xf32>
    tpu.vector_store %arg12[%c5, %c0_26], %19 {strides = array<i32>} : memref<12x192xf32, #tpu.memory_space<vmem>>, vector<1x192xf32>,
    %c6 = arith.constant 6 : index
    %c0_27 = arith.constant 0 : index
    %22 = vector.load %arg12[%c6, %c0_27] : memref<12x192xf32, #tpu.memory_space<vmem>>, vector<1x192xf32>
    tpu.vector_store %arg12[%c6, %c0_27], %19 {strides = array<i32>} : memref<12x192xf32, #tpu.memory_space<vmem>>, vector<1x192xf32>,
    %c11 = arith.constant 11 : index
    %c0_28 = arith.constant 0 : index
    %23 = vector.load %arg12[%c11, %c0_28] : memref<12x192xf32, #tpu.memory_space<vmem>>, vector<1x192xf32>
    tpu.vector_store %arg12[%c11, %c0_28], %19 {strides = array<i32>} : memref<12x192xf32, #tpu.memory_space<vmem>>, vector<1x192xf32>,
    %c0_29 = arith.constant 0 : index
    %c0_30 = arith.constant 0 : index
    %c0_31 = arith.constant 0 : index
    %24 = vector.load %arg1[%c0_29, %c0_30, %c0_31] : memref<2x16x16xf32, #tpu.memory_space<vmem>>, vector<1x16x16xf32>
    %25 = vector.shape_cast %24 : vector<1x16x16xf32> to vector<16x16xf32>
    %c1 = arith.constant 1 : index
    %c1_32 = arith.constant 1 : index
    %26 = vector.load %arg10[%c1, %c1_32] : memref<36x18xf32, #tpu.memory_space<vmem>>, vector<16x16xf32>
    tpu.vector_store %arg10[%c1, %c1_32], %25 {strides = array<i32>} : memref<36x18xf32, #tpu.memory_space<vmem>>, vector<16x16xf32>,
    %c1_33 = arith.constant 1 : index
    %c0_34 = arith.constant 0 : index
    %c0_35 = arith.constant 0 : index
    %27 = vector.load %arg1[%c1_33, %c0_34, %c0_35] : memref<2x16x16xf32, #tpu.memory_space<vmem>>, vector<1x16x16xf32>
    %28 = vector.shape_cast %27 : vector<1x16x16xf32> to vector<16x16xf32>
    %c19_36 = arith.constant 19 : index
    %c1_37 = arith.constant 1 : index
    %29 = vector.load %arg10[%c19_36, %c1_37] : memref<36x18xf32, #tpu.memory_space<vmem>>, vector<16x16xf32>
    tpu.vector_store %arg10[%c19_36, %c1_37], %28 {strides = array<i32>} : memref<36x18xf32, #tpu.memory_space<vmem>>, vector<16x16xf32>,
    %c0_38 = arith.constant 0 : index
    %c0_39 = arith.constant 0 : index
    %30 = vector.load %arg3[%c0_38, %c0_39] : memref<1x128xf32, #tpu.memory_space<vmem>>, vector<1x128xf32>
    %c0_40 = arith.constant 0 : index
    %c0_41 = arith.constant 0 : index
    %31 = vector.load %arg10[%c0_40, %c0_41] : memref<36x18xf32, #tpu.memory_space<vmem>>, vector<34x18xf32>
    %c0_42 = arith.constant 0 : index
    %c0_43 = arith.constant 0 : index
    %c0_44 = arith.constant 0 : index
    %32 = vector.load %arg2[%c0_42, %c0_43, %c0_44] : memref<3x18x256xf32, #tpu.memory_space<vmem>>, vector<1x18x256xf32>
    %33 = vector.shape_cast %32 : vector<1x18x256xf32> to vector<18x256xf32>
    %cst_45 = arith.constant dense<0.000000e+00> : vector<34x256xf32>
    %34 = tpu.matmul %31, %33, %cst_45 {dimension_numbers = #tpu.dot_dimension_numbers<[1], [0], [0], [1], [0, 0, 1, 1], [], []>} : vector<34x18xf32>, vector<18x256xf32>, vector<34x256xf32> -> vector<34x256xf32>
    %c1_46 = arith.constant 1 : index
    %c0_47 = arith.constant 0 : index
    %35 = vector.load %arg10[%c1_46, %c0_47] : memref<36x18xf32, #tpu.memory_space<vmem>>, vector<34x18xf32>
    %c1_48 = arith.constant 1 : index
    %c0_49 = arith.constant 0 : index
    %c0_50 = arith.constant 0 : index
    %36 = vector.load %arg2[%c1_48, %c0_49, %c0_50] : memref<3x18x256xf32, #tpu.memory_space<vmem>>, vector<1x18x256xf32>
    %37 = vector.shape_cast %36 : vector<1x18x256xf32> to vector<18x256xf32>
    %cst_51 = arith.constant dense<0.000000e+00> : vector<34x256xf32>
    %38 = tpu.matmul %35, %37, %cst_51 {dimension_numbers = #tpu.dot_dimension_numbers<[1], [0], [0], [1], [0, 0, 1, 1], [], []>} : vector<34x18xf32>, vector<18x256xf32>, vector<34x256xf32> -> vector<34x256xf32>
    %39 = arith.addf %34, %38 : vector<34x256xf32>
    %c2 = arith.constant 2 : index
    %c0_52 = arith.constant 0 : index
    %40 = vector.load %arg10[%c2, %c0_52] : memref<36x18xf32, #tpu.memory_space<vmem>>, vector<34x18xf32>
    %c2_53 = arith.constant 2 : index
    %c0_54 = arith.constant 0 : index
    %c0_55 = arith.constant 0 : index
    %41 = vector.load %arg2[%c2_53, %c0_54, %c0_55] : memref<3x18x256xf32, #tpu.memory_space<vmem>>, vector<1x18x256xf32>
    %42 = vector.shape_cast %41 : vector<1x18x256xf32> to vector<18x256xf32>
    %cst_56 = arith.constant dense<0.000000e+00> : vector<34x256xf32>
    %43 = tpu.matmul %40, %42, %cst_56 {dimension_numbers = #tpu.dot_dimension_numbers<[1], [0], [0], [1], [0, 0, 1, 1], [], []>} : vector<34x18xf32>, vector<18x256xf32>, vector<34x256xf32> -> vector<34x256xf32>
    %44 = arith.addf %39, %43 : vector<34x256xf32>
    %45 = vector.extract_strided_slice %44 {offsets = [0, 0], sizes = [34, 128], strides = [1, 1]} : vector<34x256xf32> to vector<34x128xf32>
    %46 = vector.extract_strided_slice %44 {offsets = [0, 128], sizes = [34, 128], strides = [1, 1]} : vector<34x256xf32> to vector<34x128xf32>
    %47 = arith.maximumf %45, %46 : vector<34x128xf32>
    %c0_57 = arith.constant 0 : index
    %c0_58 = arith.constant 0 : index
    %48 = vector.load %arg9[%c0_57, %c0_58] : memref<34x128xf32, #tpu.memory_space<vmem>>, vector<34x128xf32>
    tpu.vector_store %arg9[%c0_57, %c0_58], %47 {strides = array<i32>} : memref<34x128xf32, #tpu.memory_space<vmem>>, vector<34x128xf32>,
    %49 = vector.shape_cast %30 : vector<1x128xf32> to vector<1x128xf32>
    %50 = vector.broadcast %49 : vector<1x128xf32> to vector<8x128xf32>
    %c0_59 = arith.constant 0 : index
    %c0_60 = arith.constant 0 : index
    %51 = tpu.strided_load %arg9[%c0_59, %c0_60] {strides = array<i32: 2, 1>} : memref<34x128xf32, #tpu.memory_space<vmem>>, vector<8x128xf32>
    %c1_61 = arith.constant 1 : index
    %c0_62 = arith.constant 0 : index
    %52 = tpu.strided_load %arg9[%c1_61, %c0_62] {strides = array<i32: 2, 1>} : memref<34x128xf32, #tpu.memory_space<vmem>>, vector<8x128xf32>
    %53 = arith.maximumf %51, %52 : vector<8x128xf32>
    %54 = arith.addf %53, %50 : vector<8x128xf32>
    %cst_63 = arith.constant 0.000000e+00 : f32
    %55 = vector.broadcast %cst_63 : f32 to vector<8x128xf32>
    %56 = arith.maximumf %54, %55 : vector<8x128xf32>
    %c1_64 = arith.constant 1 : index
    %c16 = arith.constant 16 : index
    %57 = vector.load %arg11[%c1_64, %c16] : memref<20x160xf32, #tpu.memory_space<vmem>>, vector<8x128xf32>
    tpu.vector_store %arg11[%c1_64, %c16], %56 {strides = array<i32>} : memref<20x160xf32, #tpu.memory_space<vmem>>, vector<8x128xf32>,
    %c18_65 = arith.constant 18 : index
    %c0_66 = arith.constant 0 : index
    %58 = tpu.strided_load %arg9[%c18_65, %c0_66] {strides = array<i32: 2, 1>} : memref<34x128xf32, #tpu.memory_space<vmem>>, vector<8x128xf32>
    %c19_67 = arith.constant 19 : index
    %c0_68 = arith.constant 0 : index
    %59 = tpu.strided_load %arg9[%c19_67, %c0_68] {strides = array<i32: 2, 1>} : memref<34x128xf32, #tpu.memory_space<vmem>>, vector<8x128xf32>
    %60 = arith.maximumf %58, %59 : vector<8x128xf32>
    %61 = arith.addf %60, %50 : vector<8x128xf32>
    %cst_69 = arith.constant 0.000000e+00 : f32
    %62 = vector.broadcast %cst_69 : f32 to vector<8x128xf32>
    %63 = arith.maximumf %61, %62 : vector<8x128xf32>
    %c11_70 = arith.constant 11 : index
    %c16_71 = arith.constant 16 : index
    %64 = vector.load %arg11[%c11_70, %c16_71] : memref<20x160xf32, #tpu.memory_space<vmem>>, vector<8x128xf32>
    tpu.vector_store %arg11[%c11_70, %c16_71], %63 {strides = array<i32>} : memref<20x160xf32, #tpu.memory_space<vmem>>, vector<8x128xf32>,
    %c0_72 = arith.constant 0 : index
    %c0_73 = arith.constant 0 : index
    %65 = vector.load %arg5[%c0_72, %c0_73] : memref<1x128xf32, #tpu.memory_space<vmem>>, vector<1x128xf32>
    %c0_74 = arith.constant 0 : index
    %c0_75 = arith.constant 0 : index
    %66 = vector.load %arg11[%c0_74, %c0_75] : memref<20x160xf32, #tpu.memory_space<vmem>>, vector<18x160xf32>
    %c0_76 = arith.constant 0 : index
    %c0_77 = arith.constant 0 : index
    %c0_78 = arith.constant 0 : index
    %67 = vector.load %arg4[%c0_76, %c0_77, %c0_78] : memref<3x160x256xf32, #tpu.memory_space<vmem>>, vector<1x160x256xf32>
    %68 = vector.shape_cast %67 : vector<1x160x256xf32> to vector<160x256xf32>
    %cst_79 = arith.constant dense<0.000000e+00> : vector<18x256xf32>
    %69 = tpu.matmul %66, %68, %cst_79 {dimension_numbers = #tpu.dot_dimension_numbers<[1], [0], [0], [1], [0, 0, 1, 1], [], []>} : vector<18x160xf32>, vector<160x256xf32>, vector<18x256xf32> -> vector<18x256xf32>
    %c1_80 = arith.constant 1 : index
    %c0_81 = arith.constant 0 : index
    %70 = vector.load %arg11[%c1_80, %c0_81] : memref<20x160xf32, #tpu.memory_space<vmem>>, vector<18x160xf32>
    %c1_82 = arith.constant 1 : index
    %c0_83 = arith.constant 0 : index
    %c0_84 = arith.constant 0 : index
    %71 = vector.load %arg4[%c1_82, %c0_83, %c0_84] : memref<3x160x256xf32, #tpu.memory_space<vmem>>, vector<1x160x256xf32>
    %72 = vector.shape_cast %71 : vector<1x160x256xf32> to vector<160x256xf32>
    %cst_85 = arith.constant dense<0.000000e+00> : vector<18x256xf32>
    %73 = tpu.matmul %70, %72, %cst_85 {dimension_numbers = #tpu.dot_dimension_numbers<[1], [0], [0], [1], [0, 0, 1, 1], [], []>} : vector<18x160xf32>, vector<160x256xf32>, vector<18x256xf32> -> vector<18x256xf32>
    %74 = arith.addf %69, %73 : vector<18x256xf32>
    %c2_86 = arith.constant 2 : index
    %c0_87 = arith.constant 0 : index
    %75 = vector.load %arg11[%c2_86, %c0_87] : memref<20x160xf32, #tpu.memory_space<vmem>>, vector<18x160xf32>
    %c2_88 = arith.constant 2 : index
    %c0_89 = arith.constant 0 : index
    %c0_90 = arith.constant 0 : index
    %76 = vector.load %arg4[%c2_88, %c0_89, %c0_90] : memref<3x160x256xf32, #tpu.memory_space<vmem>>, vector<1x160x256xf32>
    %77 = vector.shape_cast %76 : vector<1x160x256xf32> to vector<160x256xf32>
    %cst_91 = arith.constant dense<0.000000e+00> : vector<18x256xf32>
    %78 = tpu.matmul %75, %77, %cst_91 {dimension_numbers = #tpu.dot_dimension_numbers<[1], [0], [0], [1], [0, 0, 1, 1], [], []>} : vector<18x160xf32>, vector<160x256xf32>, vector<18x256xf32> -> vector<18x256xf32>
    %79 = arith.addf %74, %78 : vector<18x256xf32>
    %80 = vector.extract_strided_slice %79 {offsets = [0, 0], sizes = [18, 128], strides = [1, 1]} : vector<18x256xf32> to vector<18x128xf32>
    %81 = vector.extract_strided_slice %79 {offsets = [0, 128], sizes = [18, 128], strides = [1, 1]} : vector<18x256xf32> to vector<18x128xf32>
    %82 = arith.maximumf %80, %81 : vector<18x128xf32>
    %c0_92 = arith.constant 0 : index
    %c0_93 = arith.constant 0 : index
    %83 = vector.load %arg9[%c0_92, %c0_93] : memref<34x128xf32, #tpu.memory_space<vmem>>, vector<18x128xf32>
    tpu.vector_store %arg9[%c0_92, %c0_93], %82 {strides = array<i32>} : memref<34x128xf32, #tpu.memory_space<vmem>>, vector<18x128xf32>,
    %84 = vector.shape_cast %65 : vector<1x128xf32> to vector<1x128xf32>
    %85 = vector.broadcast %84 : vector<1x128xf32> to vector<4x128xf32>
    %c0_94 = arith.constant 0 : index
    %c0_95 = arith.constant 0 : index
    %86 = tpu.strided_load %arg9[%c0_94, %c0_95] {strides = array<i32: 2, 1>} : memref<34x128xf32, #tpu.memory_space<vmem>>, vector<4x128xf32>
    %c1_96 = arith.constant 1 : index
    %c0_97 = arith.constant 0 : index
    %87 = tpu.strided_load %arg9[%c1_96, %c0_97] {strides = array<i32: 2, 1>} : memref<34x128xf32, #tpu.memory_space<vmem>>, vector<4x128xf32>
    %88 = arith.maximumf %86, %87 : vector<4x128xf32>
    %89 = arith.addf %88, %85 : vector<4x128xf32>
    %cst_98 = arith.constant 0.000000e+00 : f32
    %90 = vector.broadcast %cst_98 : f32 to vector<4x128xf32>
    %91 = arith.maximumf %89, %90 : vector<4x128xf32>
    %c1_99 = arith.constant 1 : index
    %c32 = arith.constant 32 : index
    %92 = vector.load %arg12[%c1_99, %c32] : memref<12x192xf32, #tpu.memory_space<vmem>>, vector<4x128xf32>
    tpu.vector_store %arg12[%c1_99, %c32], %91 {strides = array<i32>} : memref<12x192xf32, #tpu.memory_space<vmem>>, vector<4x128xf32>,
    %c10_100 = arith.constant 10 : index
    %c0_101 = arith.constant 0 : index
    %93 = tpu.strided_load %arg9[%c10_100, %c0_101] {strides = array<i32: 2, 1>} : memref<34x128xf32, #tpu.memory_space<vmem>>, vector<4x128xf32>
    %c11_102 = arith.constant 11 : index
    %c0_103 = arith.constant 0 : index
    %94 = tpu.strided_load %arg9[%c11_102, %c0_103] {strides = array<i32: 2, 1>} : memref<34x128xf32, #tpu.memory_space<vmem>>, vector<4x128xf32>
    %95 = arith.maximumf %93, %94 : vector<4x128xf32>
    %96 = arith.addf %95, %85 : vector<4x128xf32>
    %cst_104 = arith.constant 0.000000e+00 : f32
    %97 = vector.broadcast %cst_104 : f32 to vector<4x128xf32>
    %98 = arith.maximumf %96, %97 : vector<4x128xf32>
    %c7 = arith.constant 7 : index
    %c32_105 = arith.constant 32 : index
    %99 = vector.load %arg12[%c7, %c32_105] : memref<12x192xf32, #tpu.memory_space<vmem>>, vector<4x128xf32>
    tpu.vector_store %arg12[%c7, %c32_105], %98 {strides = array<i32>} : memref<12x192xf32, #tpu.memory_space<vmem>>, vector<4x128xf32>,
    %c0_106 = arith.constant 0 : index
    %c0_107 = arith.constant 0 : index
    %100 = vector.load %arg7[%c0_106, %c0_107] : memref<1x128xf32, #tpu.memory_space<vmem>>, vector<1x128xf32>
    %c0_108 = arith.constant 0 : index
    %c0_109 = arith.constant 0 : index
    %101 = vector.load %arg12[%c0_108, %c0_109] : memref<12x192xf32, #tpu.memory_space<vmem>>, vector<10x192xf32>
    %c0_110 = arith.constant 0 : index
    %c0_111 = arith.constant 0 : index
    %c0_112 = arith.constant 0 : index
    %102 = vector.load %arg6[%c0_110, %c0_111, %c0_112] : memref<3x192x256xf32, #tpu.memory_space<vmem>>, vector<1x192x256xf32>
    %103 = vector.shape_cast %102 : vector<1x192x256xf32> to vector<192x256xf32>
    %cst_113 = arith.constant dense<0.000000e+00> : vector<10x256xf32>
    %104 = tpu.matmul %101, %103, %cst_113 {dimension_numbers = #tpu.dot_dimension_numbers<[1], [0], [0], [1], [0, 0, 1, 1], [], []>} : vector<10x192xf32>, vector<192x256xf32>, vector<10x256xf32> -> vector<10x256xf32>
    %c1_114 = arith.constant 1 : index
    %c0_115 = arith.constant 0 : index
    %105 = vector.load %arg12[%c1_114, %c0_115] : memref<12x192xf32, #tpu.memory_space<vmem>>, vector<10x192xf32>
    %c1_116 = arith.constant 1 : index
    %c0_117 = arith.constant 0 : index
    %c0_118 = arith.constant 0 : index
    %106 = vector.load %arg6[%c1_116, %c0_117, %c0_118] : memref<3x192x256xf32, #tpu.memory_space<vmem>>, vector<1x192x256xf32>
    %107 = vector.shape_cast %106 : vector<1x192x256xf32> to vector<192x256xf32>
    %cst_119 = arith.constant dense<0.000000e+00> : vector<10x256xf32>
    %108 = tpu.matmul %105, %107, %cst_119 {dimension_numbers = #tpu.dot_dimension_numbers<[1], [0], [0], [1], [0, 0, 1, 1], [], []>} : vector<10x192xf32>, vector<192x256xf32>, vector<10x256xf32> -> vector<10x256xf32>
    %109 = arith.addf %104, %108 : vector<10x256xf32>
    %c2_120 = arith.constant 2 : index
    %c0_121 = arith.constant 0 : index
    %110 = vector.load %arg12[%c2_120, %c0_121] : memref<12x192xf32, #tpu.memory_space<vmem>>, vector<10x192xf32>
    %c2_122 = arith.constant 2 : index
    %c0_123 = arith.constant 0 : index
    %c0_124 = arith.constant 0 : index
    %111 = vector.load %arg6[%c2_122, %c0_123, %c0_124] : memref<3x192x256xf32, #tpu.memory_space<vmem>>, vector<1x192x256xf32>
    %112 = vector.shape_cast %111 : vector<1x192x256xf32> to vector<192x256xf32>
    %cst_125 = arith.constant dense<0.000000e+00> : vector<10x256xf32>
    %113 = tpu.matmul %110, %112, %cst_125 {dimension_numbers = #tpu.dot_dimension_numbers<[1], [0], [0], [1], [0, 0, 1, 1], [], []>} : vector<10x192xf32>, vector<192x256xf32>, vector<10x256xf32> -> vector<10x256xf32>
    %114 = arith.addf %109, %113 : vector<10x256xf32>
    %115 = vector.extract_strided_slice %114 {offsets = [0, 0], sizes = [10, 128], strides = [1, 1]} : vector<10x256xf32> to vector<10x128xf32>
    %116 = vector.extract_strided_slice %114 {offsets = [0, 128], sizes = [10, 128], strides = [1, 1]} : vector<10x256xf32> to vector<10x128xf32>
    %117 = arith.maximumf %115, %116 : vector<10x128xf32>
    %c0_126 = arith.constant 0 : index
    %c0_127 = arith.constant 0 : index
    %118 = vector.load %arg9[%c0_126, %c0_127] : memref<34x128xf32, #tpu.memory_space<vmem>>, vector<10x128xf32>
    tpu.vector_store %arg9[%c0_126, %c0_127], %117 {strides = array<i32>} : memref<34x128xf32, #tpu.memory_space<vmem>>, vector<10x128xf32>,
    %119 = vector.shape_cast %100 : vector<1x128xf32> to vector<1x128xf32>
    %120 = vector.broadcast %119 : vector<1x128xf32> to vector<2x128xf32>
    %c0_128 = arith.constant 0 : index
    %c0_129 = arith.constant 0 : index
    %121 = tpu.strided_load %arg9[%c0_128, %c0_129] {strides = array<i32: 2, 1>} : memref<34x128xf32, #tpu.memory_space<vmem>>, vector<2x128xf32>
    %c1_130 = arith.constant 1 : index
    %c0_131 = arith.constant 0 : index
    %122 = tpu.strided_load %arg9[%c1_130, %c0_131] {strides = array<i32: 2, 1>} : memref<34x128xf32, #tpu.memory_space<vmem>>, vector<2x128xf32>
    %123 = arith.maximumf %121, %122 : vector<2x128xf32>
    %124 = arith.addf %123, %120 : vector<2x128xf32>
    %cst_132 = arith.constant 0.000000e+00 : f32
    %125 = vector.broadcast %cst_132 : f32 to vector<2x128xf32>
    %126 = arith.maximumf %124, %125 : vector<2x128xf32>
    %c0_133 = arith.constant 0 : index
    %c0_134 = arith.constant 0 : index
    %c0_135 = arith.constant 0 : index
    %127 = vector.load %arg8[%c0_133, %c0_134, %c0_135] : memref<2x2x128xf32, #tpu.memory_space<vmem>>, vector<1x2x128xf32>
    %128 = vector.shape_cast %127 : vector<1x2x128xf32> to vector<2x128xf32>
    %129 = vector.shape_cast %126 : vector<2x128xf32> to vector<1x2x128xf32>
    tpu.vector_store %arg8[%c0_133, %c0_134, %c0_135], %129 {strides = array<i32>} : memref<2x2x128xf32, #tpu.memory_space<vmem>>, vector<1x2x128xf32>,
    %c6_136 = arith.constant 6 : index
    %c0_137 = arith.constant 0 : index
    %130 = tpu.strided_load %arg9[%c6_136, %c0_137] {strides = array<i32: 2, 1>} : memref<34x128xf32, #tpu.memory_space<vmem>>, vector<2x128xf32>
    %c7_138 = arith.constant 7 : index
    %c0_139 = arith.constant 0 : index
    %131 = tpu.strided_load %arg9[%c7_138, %c0_139] {strides = array<i32: 2, 1>} : memref<34x128xf32, #tpu.memory_space<vmem>>, vector<2x128xf32>
    %132 = arith.maximumf %130, %131 : vector<2x128xf32>
    %133 = arith.addf %132, %120 : vector<2x128xf32>
    %cst_140 = arith.constant 0.000000e+00 : f32
    %134 = vector.broadcast %cst_140 : f32 to vector<2x128xf32>
    %135 = arith.maximumf %133, %134 : vector<2x128xf32>
    %c1_141 = arith.constant 1 : index
    %c0_142 = arith.constant 0 : index
    %c0_143 = arith.constant 0 : index
    %136 = vector.load %arg8[%c1_141, %c0_142, %c0_143] : memref<2x2x128xf32, #tpu.memory_space<vmem>>, vector<1x2x128xf32>
    %137 = vector.shape_cast %136 : vector<1x2x128xf32> to vector<2x128xf32>
    %138 = vector.shape_cast %135 : vector<2x128xf32> to vector<1x2x128xf32>
    tpu.vector_store %arg8[%c1_141, %c0_142, %c0_143], %138 {strides = array<i32>} : memref<2x2x128xf32, #tpu.memory_space<vmem>>, vector<1x2x128xf32>,
    return
  }
  func.func @transform_0(%arg0: i32) -> (i32, i32, i32) {
    %c0_i32 = arith.constant 0 : i32
    %c0_i32_0 = arith.constant 0 : i32
    %c0_i32_1 = arith.constant 0 : i32
    return %arg0, %c0_i32, %c0_i32_0 : i32, i32, i32
  }
  func.func @transform_1(%arg0: i32) -> (i32, i32, i32) {
    %c0_i32 = arith.constant 0 : i32
    %c0_i32_0 = arith.constant 0 : i32
    %c0_i32_1 = arith.constant 0 : i32
    %c0_i32_2 = arith.constant 0 : i32
    return %c0_i32, %c0_i32_0, %c0_i32_1 : i32, i32, i32
  }
  func.func @transform_2(%arg0: i32) -> (i32, i32) {
    %c0_i32 = arith.constant 0 : i32
    %c0_i32_0 = arith.constant 0 : i32
    %c0_i32_1 = arith.constant 0 : i32
    return %c0_i32, %c0_i32_0 : i32, i32
  }
  func.func @transform_3(%arg0: i32) -> (i32, i32, i32) {
    %c0_i32 = arith.constant 0 : i32
    %c0_i32_0 = arith.constant 0 : i32
    %c0_i32_1 = arith.constant 0 : i32
    %c0_i32_2 = arith.constant 0 : i32
    return %c0_i32, %c0_i32_0, %c0_i32_1 : i32, i32, i32
  }
  func.func @transform_4(%arg0: i32) -> (i32, i32) {
    %c0_i32 = arith.constant 0 : i32
    %c0_i32_0 = arith.constant 0 : i32
    %c0_i32_1 = arith.constant 0 : i32
    return %c0_i32, %c0_i32_0 : i32, i32
  }
  func.func @transform_5(%arg0: i32) -> (i32, i32, i32) {
    %c0_i32 = arith.constant 0 : i32
    %c0_i32_0 = arith.constant 0 : i32
    %c0_i32_1 = arith.constant 0 : i32
    %c0_i32_2 = arith.constant 0 : i32
    return %c0_i32, %c0_i32_0, %c0_i32_1 : i32, i32, i32
  }
  func.func @transform_6(%arg0: i32) -> (i32, i32) {
    %c0_i32 = arith.constant 0 : i32
    %c0_i32_0 = arith.constant 0 : i32
    %c0_i32_1 = arith.constant 0 : i32
    return %c0_i32, %c0_i32_0 : i32, i32
  }
  func.func @transform_7(%arg0: i32) -> (i32, i32, i32) {
    %c0_i32 = arith.constant 0 : i32
    %c0_i32_0 = arith.constant 0 : i32
    %c0_i32_1 = arith.constant 0 : i32
    return %arg0, %c0_i32, %c0_i32_0 : i32, i32, i32
  }
}

</mosaic_0001>

<llo_original>
// kernel: tile.18
$region0: #{tile.18}
  #allocation0 [shape = 's32[1]{0}', space=sflag, size = 0x4, scoped, tag = 'scoped memory for tile.18']
  %s0 = inlined_call_operand.vmem [shape: f32[16], index: 0, kind: input, shape index: {}]
  %s1 = inlined_call_operand.vmem [shape: f32[8,16], index: 1, kind: output, shape index: {}]
  // Predicated region
  $region2: #{tile.18} parent=0 // pred_check
    _
  $region3: #{tile.18} parent=0 // pred_check_branch
    %3 = sbr.rel (0) target = $region5
  $region4: #{tile.18} parent=0 // pred_region
    _
  $region5: #{tile.18} parent=0 // pred_fallthru
    _
  %v4 = vld [vmem:[%s0] ss:$0 sm:$0xff]
  %5 = vst [vmem:[%s1] sm:$0xff] %v4

// kernel: tile.19
$region0: #{tile.19}
  %s0 = inlined_call_operand.vmem [shape: f32[8,16], index: 0, kind: input, shape index: {}]
  %s1 = inlined_call_operand.vmem [shape: f32[1,128], index: 1, kind: output, shape index: {}]
  $region1: #{tile.19} parent=0
    #allocation0 [shape = 'u8[4096]{0}', space=vmem, size = 0x1000, scoped, tag = 'scoped mem for output reshape']
    %v2 = vld [vmem:[%s0] sm:$0x1]
    %vm3 = vcmask 130048
    %4 = vst.msk [vmem:[#allocation0] sm:$0x1] %vm3, %v2
    %s5 = scalar_lea.vmem %s0, 7
    %v6 = vld [vmem:[%s5] sm:$0x1]
    %7 = vrot.lane.b32.xlu0 %v6, 112
    %v8 = vpop.permute.xlu0 %7
    %vm9 = vcmask 1048448
    %10 = vst.msk [vmem:[#allocation0] sm:$0x1] %vm9, %v8
    %s11 = scalar_lea.vmem %s0, 6
    %v12 = vld [vmem:[%s11] sm:$0x1]
    %13 = vrot.lane.b32.xlu0 %v12, 96
    %v14 = vpop.permute.xlu0 %13
    %vm15 = vcmask 917248
    %16 = vst.msk [vmem:[#allocation0] sm:$0x1] %vm15, %v14
    %s17 = scalar_lea.vmem %s0, 5
    %v18 = vld [vmem:[%s17] sm:$0x1]
    %19 = vrot.lane.b32.xlu0 %v18, 80
    %v20 = vpop.permute.xlu0 %19
    %vm21 = vcmask 786048
    %22 = vst.msk [vmem:[#allocation0] sm:$0x1] %vm21, %v20
    %s23 = scalar_lea.vmem %s0, 4
    %v24 = vld [vmem:[%s23] sm:$0x1]
    %25 = vrot.lane.b32.xlu0 %v24, 64
    %v26 = vpop.permute.xlu0 %25
    %vm27 = vcmask 654848
    %28 = vst.msk [vmem:[#allocation0] sm:$0x1] %vm27, %v26
    %s29 = scalar_lea.vmem %s0, 3
    %v30 = vld [vmem:[%s29] sm:$0x1]
    %31 = vrot.lane.b32.xlu0 %v30, 48
    %v32 = vpop.permute.xlu0 %31
    %vm33 = vcmask 523648
    %34 = vst.msk [vmem:[#allocation0] sm:$0x1] %vm33, %v32
    %s35 = scalar_lea.vmem %s0, 2
    %v36 = vld [vmem:[%s35] sm:$0x1]
    %37 = vrot.lane.b32.xlu0 %v36, 32
    %v38 = vpop.permute.xlu0 %37
    %vm39 = vcmask 392448
    %40 = vst.msk [vmem:[#allocation0] sm:$0x1] %vm39, %v38
    %s41 = scalar_lea.vmem %s0, 1
    %v42 = vld [vmem:[%s41] sm:$0x1]
    %43 = vrot.lane.b32.xlu0 %v42, 16
    %v44 = vpop.permute.xlu0 %43
    %vm45 = vcmask 261248
    %46 = vst.msk [vmem:[#allocation0] sm:$0x1] %vm45, %v44
    %s48 = sshll.u32 1, 1
    %s49 = ssub.s32 %s48, 1
    %v51 = vld [vmem:[#allocation0] sm:%s49]
    %s52 = sshll.u32 1, 1
    %s53 = ssub.s32 %s52, 1
    %54 = vst [vmem:[%s1] sm:%s53] %v51

// kernel: tile.23
$region0: #{tile.23}
  #allocation0 [shape = 's32[1]{0}', space=sflag, size = 0x4, scoped, tag = 'scoped memory for tile.23']
  %s0 = inlined_call_operand.vmem [shape: f32[32], index: 0, kind: input, shape index: {}]
  %s1 = inlined_call_operand.vmem [shape: f32[4,32], index: 1, kind: output, shape index: {}]
  // Predicated region
  $region2: #{tile.23} parent=0 // pred_check
    _
  $region3: #{tile.23} parent=0 // pred_check_branch
    %3 = sbr.rel (0) target = $region5
  $region4: #{tile.23} parent=0 // pred_region
    _
  $region5: #{tile.23} parent=0 // pred_fallthru
    _
  %v4 = vld [vmem:[%s0] ss:$0 sm:$0xff]
  %5 = vst [vmem:[%s1] sm:$0xf] %v4

// kernel: tile.24
$region0: #{tile.24}
  %s0 = inlined_call_operand.vmem [shape: f32[4,32], index: 0, kind: input, shape index: {}]
  %s1 = inlined_call_operand.vmem [shape: f32[1,128], index: 1, kind: output, shape index: {}]
  $region1: #{tile.24} parent=0
    #allocation0 [shape = 'u8[4096]{0}', space=vmem, size = 0x1000, scoped, tag = 'scoped mem for output reshape']
    #allocation1 [shape = 'u8[4096]{0}', space=vmem, size = 0x1000, scoped, tag = 'scoped mem for input reshape']
    %s3 = sshll.u32 1, 4
    %s4 = ssub.s32 %s3, 1
    %v5 = vld [vmem:[%s0] sm:%s4]
    %6 = vst [vmem:[#allocation1] sm:%s4] %v5
    %v7 = vld [vmem:[#allocation1] sm:$0x1]
    %vm8 = vcmask 261120
    %9 = vst.msk [vmem:[#allocation0] sm:$0x1] %vm8, %v7
    %s10 = scalar_lea.vmem [#allocation1], 3
    %v11 = vld [vmem:[%s10] sm:$0x1]
    %12 = vrot.lane.b32.xlu0 %v11, 96
    %v13 = vpop.permute.xlu0 %12
    %vm14 = vcmask 1048320
    %15 = vst.msk [vmem:[#allocation0] sm:$0x1] %vm14, %v13
    %s16 = scalar_lea.vmem [#allocation1], 2
    %v17 = vld [vmem:[%s16] sm:$0x1]
    %18 = vrot.lane.b32.xlu0 %v17, 64
    %v19 = vpop.permute.xlu0 %18
    %vm20 = vcmask 785920
    %21 = vst.msk [vmem:[#allocation0] sm:$0x1] %vm20, %v19
    %s22 = scalar_lea.vmem [#allocation1], 1
    %v23 = vld [vmem:[%s22] sm:$0x1]
    %24 = vrot.lane.b32.xlu0 %v23, 32
    %v25 = vpop.permute.xlu0 %24
    %vm26 = vcmask 523520
    %27 = vst.msk [vmem:[#allocation0] sm:$0x1] %vm26, %v25
    %s29 = sshll.u32 1, 1
    %s30 = ssub.s32 %s29, 1
    %v32 = vld [vmem:[#allocation0] sm:%s30]
    %s33 = sshll.u32 1, 1
    %s34 = ssub.s32 %s33, 1
    %35 = vst [vmem:[%s1] sm:%s34] %v32

// kernel: tile.28
$region0: #{tile.28}
  #allocation0 [shape = 's32[1]{0}', space=sflag, size = 0x4, scoped, tag = 'scoped memory for tile.28']
  %s0 = inlined_call_operand.vmem [shape: f32[64], index: 0, kind: input, shape index: {}]
  %s1 = inlined_call_operand.vmem [shape: f32[2,64], index: 1, kind: output, shape index: {}]
  // Predicated region
  $region2: #{tile.28} parent=0 // pred_check
    _
  $region3: #{tile.28} parent=0 // pred_check_branch
    %3 = sbr.rel (0) target = $region5
  $region4: #{tile.28} parent=0 // pred_region
    _
  $region5: #{tile.28} parent=0 // pred_fallthru
    _
  %v4 = vld [vmem:[%s0] ss:$0 sm:$0xff]
  %5 = vst [vmem:[%s1] sm:$0x3] %v4

// kernel: tile.29
$region0: #{tile.29}
  %s0 = inlined_call_operand.vmem [shape: f32[2,64], index: 0, kind: input, shape index: {}]
  %s1 = inlined_call_operand.vmem [shape: f32[1,128], index: 1, kind: output, shape index: {}]
  $region1: #{tile.29} parent=0
    #allocation0 [shape = 'u8[4096]{0}', space=vmem, size = 0x1000, scoped, tag = 'scoped mem for output reshape']
    #allocation1 [shape = 'u8[4096]{0}', space=vmem, size = 0x1000, scoped, tag = 'scoped mem for input reshape']
    %s3 = sshll.u32 1, 2
    %s4 = ssub.s32 %s3, 1
    %v5 = vld [vmem:[%s0] sm:%s4]
    %6 = vst [vmem:[#allocation1] sm:%s4] %v5
    %v7 = vld [vmem:[#allocation1] sm:$0x1]
    %vm8 = vcmask 523264
    %9 = vst.msk [vmem:[#allocation0] sm:$0x1] %vm8, %v7
    %s10 = scalar_lea.vmem [#allocation1], 1
    %v11 = vld [vmem:[%s10] sm:$0x1]
    %12 = vrot.lane.b32.xlu0 %v11, 64
    %v13 = vpop.permute.xlu0 %12
    %vm14 = vcmask 1048064
    %15 = vst.msk [vmem:[#allocation0] sm:$0x1] %vm14, %v13
    %s17 = sshll.u32 1, 1
    %s18 = ssub.s32 %s17, 1
    %v20 = vld [vmem:[#allocation0] sm:%s18]
    %s21 = sshll.u32 1, 1
    %s22 = ssub.s32 %s21, 1
    %23 = vst [vmem:[%s1] sm:%s22] %v20

// kernel: cnn_encoder_forward.1
$region0: #{cnn_encoder_forward.1}
  #allocation0 [shape = 'u32[]', space=smem, size = 0x4, offset = 0x4, fixed_abs, tag = 'smem constant byte address 0x4 - core index']
  #allocation1 [shape = 'u32[144,128]{1,0:T(1,128)}', space=vmem, size = 0x12000, scoped, tag = 'internal scratch']
  #allocation2 [shape = 'f32[34,128]{1,0:T(8,128)}', space=vmem, size = 0x5000, scoped, tag = 'scratch operand']
  #allocation3 [shape = 'f32[36,18]{1,0:T(8,128)}', space=vmem, size = 0x5000, scoped, tag = 'scratch operand']
  #allocation4 [shape = 'f32[20,160]{1,0:T(8,128)}', space=vmem, size = 0x6000, scoped, tag = 'scratch operand']
  #allocation5 [shape = 'f32[12,192]{1,0:T(8,128)}', space=vmem, size = 0x4000, scoped, tag = 'scratch operand']
  %s0 = inlined_call_operand.vmem [shape: f32[2,16,16], index: 0, kind: input, shape index: {}]
  %s1 = inlined_call_operand.vmem [shape: f32[3,18,256], index: 1, kind: input, shape index: {}]
  %s2 = inlined_call_operand.vmem [shape: f32[1,128], index: 2, kind: input, shape index: {}]
  %s3 = inlined_call_operand.vmem [shape: f32[3,160,256], index: 3, kind: input, shape index: {}]
  %s4 = inlined_call_operand.vmem [shape: f32[1,128], index: 4, kind: input, shape index: {}]
  %s5 = inlined_call_operand.vmem [shape: f32[3,192,256], index: 5, kind: input, shape index: {}]
  %s6 = inlined_call_operand.vmem [shape: f32[1,128], index: 6, kind: input, shape index: {}]
  %s7 = inlined_call_operand.vmem [shape: f32[2,2,128], index: 7, kind: output, shape index: {}]
  %s8 = sld [smem:[#allocation0]]
  $region38: #{cnn_encoder_forward.1} parent=0
    _
  %s10 = ssub.s32 1, %s8
  %s11 = scalar_select 0, %s10, %s8
  // Predicated region
  $region2: #{cnn_encoder_forward.1} parent=0 // pred_check
    _
  $region3: #{cnn_encoder_forward.1} parent=0 // pred_check_branch
    %13 = sbr.rel (0) target = $region5
  $region4: #{cnn_encoder_forward.1} parent=0 // pred_region
    _
  $region5: #{cnn_encoder_forward.1} parent=0 // pred_fallthru
    _
  // Predicated region
  $region6: #{cnn_encoder_forward.1} parent=0 // pred_check
    _
  $region7: #{cnn_encoder_forward.1} parent=0 // pred_check_branch
    %15 = sbr.rel (0) target = $region9
  $region8: #{cnn_encoder_forward.1} parent=0 // pred_region
    _
  $region9: #{cnn_encoder_forward.1} parent=0 // pred_fallthru
    _
  // Predicated region
  $region10: #{cnn_encoder_forward.1} parent=0 // pred_check
    _
  $region11: #{cnn_encoder_forward.1} parent=0 // pred_check_branch
    %17 = sbr.rel (0) target = $region13
  $region12: #{cnn_encoder_forward.1} parent=0 // pred_region
    _
  $region13: #{cnn_encoder_forward.1} parent=0 // pred_fallthru
    _
  // Predicated region
  $region14: #{cnn_encoder_forward.1} parent=0 // pred_check
    _
  $region15: #{cnn_encoder_forward.1} parent=0 // pred_check_branch
    %19 = sbr.rel (0) target = $region17
  $region16: #{cnn_encoder_forward.1} parent=0 // pred_region
    _
  $region17: #{cnn_encoder_forward.1} parent=0 // pred_fallthru
    _
  // Predicated region
  $region18: #{cnn_encoder_forward.1} parent=0 // pred_check
    _
  $region19: #{cnn_encoder_forward.1} parent=0 // pred_check_branch
    %21 = sbr.rel (0) target = $region21
  $region20: #{cnn_encoder_forward.1} parent=0 // pred_region
    _
  $region21: #{cnn_encoder_forward.1} parent=0 // pred_fallthru
    _
  // Predicated region
  $region22: #{cnn_encoder_forward.1} parent=0 // pred_check
    _
  $region23: #{cnn_encoder_forward.1} parent=0 // pred_check_branch
    %23 = sbr.rel (0) target = $region25
  $region24: #{cnn_encoder_forward.1} parent=0 // pred_region
    _
  $region25: #{cnn_encoder_forward.1} parent=0 // pred_fallthru
    _
  // Predicated region
  $region26: #{cnn_encoder_forward.1} parent=0 // pred_check
    _
  $region27: #{cnn_encoder_forward.1} parent=0 // pred_check_branch
    %25 = sbr.rel (0) target = $region29
  $region28: #{cnn_encoder_forward.1} parent=0 // pred_region
    _
  $region29: #{cnn_encoder_forward.1} parent=0 // pred_fallthru
    _
  %vm26 = vcmask 7168
  %27 = vst.msk [vmem:[#allocation3] sm:$0xff] %vm26, 0.0
  %28 = vst.msk [vmem:[#allocation3 + $0x8] sm:$0xff] %vm26, 0.0
  %29 = vst.msk [vmem:[#allocation3 + $0x10] sm:$0xff] %vm26, 0.0
  %30 = vst.msk [vmem:[#allocation3 + $0x18] sm:$0xff] %vm26, 0.0
  %vm31 = vcmask 3072
  %32 = vst.msk [vmem:[#allocation3 + $0x20] sm:$0xf] %vm31, 0.0
  %vm33 = vcmask 146568
  %34 = vst.msk [vmem:[#allocation3] sm:$0xff] %vm33, 0.0
  %35 = vst.msk [vmem:[#allocation3 + $0x8] sm:$0xff] %vm33, 0.0
  %36 = vst.msk [vmem:[#allocation3 + $0x10] sm:$0xff] %vm33, 0.0
  %37 = vst.msk [vmem:[#allocation3 + $0x18] sm:$0xff] %vm33, 0.0
  %vm38 = vcmask 142472
  %39 = vst.msk [vmem:[#allocation3 + $0x20] sm:$0xf] %vm38, 0.0
  %vm40 = vcmask 139264
  %41 = vst.msk [vmem:[#allocation3] sm:$0x1] %vm40, 0.0
  %42 = vst.msk [vmem:[#allocation3 + $0x11] sm:$0x1] %vm40, 0.0
  %43 = vst.msk [vmem:[#allocation3 + $0x12] sm:$0x1] %vm40, 0.0
  %44 = vst.msk [vmem:[#allocation3 + $0x23] sm:$0x1] %vm40, 0.0
  %vm45 = vcmask 130048
  %46 = vst.msk [vmem:[#allocation4] sm:$0xff] %vm45, 0.0
  %47 = vst.msk [vmem:[#allocation4 + $0x10] sm:$0xff] %vm45, 0.0
  %vm48 = vcmask 125952
  %49 = vst.msk [vmem:[#allocation4 + $0x20] sm:$0xf] %vm48, 0.0
  %vm50 = vcmask 261248
  %51 = vst.msk [vmem:[#allocation4 + $0x8] sm:$0xff] %vm50, 0.0
  %52 = vst.msk [vmem:[#allocation4 + $0x18] sm:$0xff] %vm50, 0.0
  %vm53 = vcmask 257152
  %54 = vst.msk [vmem:[#allocation4 + $0x28] sm:$0xf] %vm53, 0.0
  %v55 = vlaneseq
  %vm56 = vcmp.ge.s32.totalorder %v55, 0
  %vm57 = vcmp.lt.s32.totalorder %v55, 160
  %vm58 = vmand %vm56, %vm57
  %59 = vst.msk [vmem:[#allocation4] ss:$8 sm:$0x3] %vm58, 0.0
  %60 = vst.msk [vmem:[#allocation4] ss:$8 sm:$0x0] %vm58, 0.0
  %s61 = scalar_lea.vmem [#allocation4], 17
  %62 = vst.msk [vmem:[%s61] ss:$8 sm:$0x3] %vm58, 0.0
  %63 = vst.msk [vmem:[%s61] ss:$8 sm:$0x0] %vm58, 0.0
  %s64 = scalar_lea.vmem [#allocation4], 18
  %65 = vst.msk [vmem:[%s64] ss:$8 sm:$0x3] %vm58, 0.0
  %66 = vst.msk [vmem:[%s64] ss:$8 sm:$0x0] %vm58, 0.0
  %s67 = scalar_lea.vmem [#allocation4], 35
  %68 = vst.msk [vmem:[%s67] ss:$8 sm:$0x3] %vm58, 0.0
  %69 = vst.msk [vmem:[%s67] ss:$8 sm:$0x0] %vm58, 0.0
  %vm70 = vcmask 261120
  %71 = vst.msk [vmem:[#allocation5] sm:$0xff] %vm70, 0.0
  %vm72 = vcmask 257024
  %73 = vst.msk [vmem:[#allocation5 + $0x10] sm:$0xf] %vm72, 0.0
  %vm74 = vcmask 523520
  %75 = vst.msk [vmem:[#allocation5 + $0x8] sm:$0xff] %vm74, 0.0
  %vm76 = vcmask 519424
  %77 = vst.msk [vmem:[#allocation5 + $0x18] sm:$0xf] %vm76, 0.0
  %vm78 = vcmp.lt.s32.totalorder %v55, 192
  %vm79 = vmand %vm56, %vm78
  %80 = vst.msk [vmem:[#allocation5] ss:$8 sm:$0x3] %vm79, 0.0
  %81 = vst.msk [vmem:[#allocation5] ss:$8 sm:$0x0] %vm79, 0.0
  %s82 = scalar_lea.vmem [#allocation5], 5
  %83 = vst.msk [vmem:[%s82] ss:$8 sm:$0x3] %vm79, 0.0
  %84 = vst.msk [vmem:[%s82] ss:$8 sm:$0x0] %vm79, 0.0
  %s85 = scalar_lea.vmem [#allocation5], 6
  %86 = vst.msk [vmem:[%s85] ss:$8 sm:$0x3] %vm79, 0.0
  %87 = vst.msk [vmem:[%s85] ss:$8 sm:$0x0] %vm79, 0.0
  %s88 = scalar_lea.vmem [#allocation5], 19
  %89 = vst.msk [vmem:[%s88] ss:$8 sm:$0x3] %vm79, 0.0
  %90 = vst.msk [vmem:[%s88] ss:$8 sm:$0x0] %vm79, 0.0
  %v91 = vld [vmem:[%s0] sm:$0xff]
  %v92 = vld [vmem:[%s0 + $0x8] sm:$0xff]
  %95 = vrot.lane.b32.xlu0 %v91, 1
  %v96 = vpop.permute.xlu0 %95
  %97 = vrot.lane.b32.xlu0 %v92, 1
  %v98 = vpop.permute.xlu0 %97
  %vm101 = vcmask 138248
  %102 = vst.msk [vmem:[#allocation3 + $0x1] sm:$0xff] %vm101, %v96
  %103 = vst.msk [vmem:[#allocation3 + $0x9] sm:$0xff] %vm101, %v98
  %s104 = scalar_lea.vmem %s0, 16
  %v105 = vld [vmem:[%s104] sm:$0xff]
  %v106 = vld [vmem:[%s104 + $0x8] sm:$0xff]
  %109 = vrot.lane.b32.xlu0 %v105, 1
  %v110 = vpop.permute.xlu0 %109
  %111 = vrot.lane.b32.xlu0 %v106, 1
  %v112 = vpop.permute.xlu0 %111
  %115 = vst.msk [vmem:[#allocation3 + $0x13] sm:$0xff] %vm101, %v110
  %116 = vst.msk [vmem:[#allocation3 + $0x1b] sm:$0xff] %vm101, %v112
  %v117 = vld [vmem:[%s2] sm:$0x1]
  %v118 = vld [vmem:[#allocation3] sm:$0xff]
  %v119 = vld [vmem:[#allocation3 + $0x8] sm:$0xff]
  %v120 = vld [vmem:[#allocation3 + $0x10] sm:$0xff]
  %v121 = vld [vmem:[#allocation3 + $0x18] sm:$0xff]
  %v122 = vld [vmem:[#allocation3 + $0x20] sm:$0x3]
  %v123 = vld [vmem:[%s1] sm:$0xff]
  %v124 = vld [vmem:[%s1 + $0x8] sm:$0xff]
  %v125 = vld [vmem:[%s1 + $0x10] sm:$0xff]
  %v126 = vld [vmem:[%s1 + $0x18] sm:$0xff]
  %v127 = vld [vmem:[%s1 + $0x20] sm:$0x3]
  %v128 = vld [vmem:[%s1 + $0x28] sm:$0x3]
  %v129 = vld [vmem:[#allocation3 + $0x1] sm:$0xff]
  %v130 = vld [vmem:[#allocation3 + $0x9] sm:$0xff]
  %v131 = vld [vmem:[#allocation3 + $0x11] sm:$0xff]
  %v132 = vld [vmem:[#allocation3 + $0x19] sm:$0xff]
  %v133 = vld [vmem:[#allocation3 + $0x21] sm:$0x3]
  %s134 = scalar_lea.vmem %s1, 48
  %v135 = vld [vmem:[%s134] sm:$0xff]
  %v136 = vld [vmem:[%s134 + $0x8] sm:$0xff]
  %v137 = vld [vmem:[%s134 + $0x10] sm:$0xff]
  %v138 = vld [vmem:[%s134 + $0x18] sm:$0xff]
  %v139 = vld [vmem:[%s134 + $0x20] sm:$0x3]
  %v140 = vld [vmem:[%s134 + $0x28] sm:$0x3]
  %vm141 = vcmask 146432
  %v143 = vsel %vm141, %v129, 0
  %v146 = vsel %vm141, %v130, 0
  %v149 = vsel %vm141, %v131, 0
  %v152 = vsel %vm141, %v132, 0
  %v155 = vsel %vm141, %v133, 0
  %vm157 = vcmask 1041408
  %v159 = vsel %vm157, %v139, 0
  %v162 = vsel %vm157, %v140, 0
  %164 = vmatprep.subr.mxu0 0.0
  %165 = vmatpush1.msra.mxu0 0.0
  %166 = vmatprep.subr.mxu0 0.0
  %167 = vmatpush1.msra.mxu0 0.0
  %168 = vmatprep.subr.mxu0 0.0
  %169 = vmatpush1.msra.mxu0 0.0
  %170 = vmatprep.subr.mxu0 0.0
  %171 = vmatpush1.msra.mxu0 0.0
  %172 = vmatprep.subr.mxu0 0.0
  %173 = vmatpush1.msra.mxu0 0.0
  %174 = vmatprep.subr.mxu0 0.0
  %175 = vmatpush1.msra.mxu0 0.0
  %176 = vmatprep.subr.mxu0 0.0
  %177 = vmatpush1.msra.mxu0 0.0
  %178 = vmatprep.subr.mxu0 0.0
  %179 = vmatpush1.msra.mxu0 0.0
  %180 = vmatprep.subr.mxu0 0.0
  %181 = vmatpush1.msra.mxu0 0.0
  %182 = vmatprep.subr.mxu0 0.0
  %183 = vmatpush1.msra.mxu0 0.0
  %184 = vmatprep.subr.mxu0 0.0
  %185 = vmatpush1.msra.mxu0 0.0
  %186 = vmatprep.subr.mxu0 0.0
  %187 = vmatpush1.msra.mxu0 0.0
  %188 = vmatprep.subr.mxu0 0.0
  %189 = vmatpush1.msra.mxu0 0.0
  %190 = vmatprep.subr.mxu0 %v162
  %191 = vmatpush1.msra.mxu0 %v159
  %192 = vmatprep.subr.mxu0 %v138
  %193 = vmatpush1.msra.mxu0 %v137
  %194 = vmatprep.subr.mxu0 %v136
  %195 = vmatpush1.msra.mxu0 %v135
  %196 = vmatprep.subr.mxu0 0.0
  %197 = vmatpush2.msra.mxu0 0.0
  %198 = vmatprep.subr.mxu0 0.0
  %199 = vmatpush2.msra.mxu0 0.0
  %200 = vmatprep.subr.mxu0 0.0
  %201 = vmatpush2.msra.mxu0 0.0
  %202 = vmatprep.subr.mxu0 0.0
  %203 = vmatpush2.msra.mxu0 0.0
  %204 = vmatprep.subr.mxu0 0.0
  %205 = vmatpush2.msra.mxu0 0.0
  %206 = vmatprep.subr.mxu0 0.0
  %207 = vmatpush2.msra.mxu0 0.0
  %208 = vmatprep.subr.mxu0 0.0
  %209 = vmatpush2.msra.mxu0 0.0
  %210 = vmatprep.subr.mxu0 0.0
  %211 = vmatpush2.msra.mxu0 0.0
  %212 = vmatprep.subr.mxu0 0.0
  %213 = vmatpush2.msra.mxu0 0.0
  %214 = vmatprep.subr.mxu0 0.0
  %215 = vmatpush2.msra.mxu0 0.0
  %216 = vmatprep.subr.mxu0 0.0
  %217 = vmatpush2.msra.mxu0 0.0
  %218 = vmatprep.subr.mxu0 0.0
  %219 = vmatpush2.msra.mxu0 0.0
  %220 = vmatprep.subr.mxu0 0.0
  %221 = vmatpush2.msra.mxu0 0.0
  %222 = vmatprep.subr.mxu0 0.0
  %223 = vmatpush2.msra.mxu0 0.0
  %224 = vmatprep.subr.mxu0 0.0
  %225 = vmatpush2.msra.mxu0 0.0
  %226 = vmatprep.subr.mxu0 0.0
  %227 = vmatpush2.msra.mxu0 0.0
  %228 = vmatprep.mubr.f32.mxu0 0.0
  %229 = vmatmul.mubr.f32.gmra.mxu0 %v143
  %v230 = vpop.f32.mrf.mxu0
  %v231 = vadd.f32 0.0, %v230
  %v232 = vpop.f32.mrf.mxu0
  %v233 = vadd.f32 0.0, %v232
  %234 = vmatprep.mubr.f32.mxu0 0.0
  %235 = vmatmul.mubr.f32.gmra.mxu0 %v146
  %v236 = vpop.f32.mrf.mxu0
  %v237 = vadd.f32 0.0, %v236
  %v238 = vpop.f32.mrf.mxu0
  %v239 = vadd.f32 0.0, %v238
  %240 = vmatprep.mubr.f32.mxu0 0.0
  %241 = vmatmul.mubr.f32.gmra.mxu0 %v149
  %v242 = vpop.f32.mrf.mxu0
  %v243 = vadd.f32 0.0, %v242
  %v244 = vpop.f32.mrf.mxu0
  %v245 = vadd.f32 0.0, %v244
  %246 = vmatprep.mubr.f32.mxu0 0.0
  %247 = vmatmul.mubr.f32.gmra.mxu0 %v152
  %v248 = vpop.f32.mrf.mxu0
  %v249 = vadd.f32 0.0, %v248
  %v250 = vpop.f32.mrf.mxu0
  %v251 = vadd.f32 0.0, %v250
  %252 = vmatprep.mubr.f32.mxu0 0.0
  %253 = vmatmul.mubr.f32.gmra.mxu0 %v155
  %v254 = vpop.f32.mrf.mxu0
  %v255 = vadd.f32 0.0, %v254
  %v256 = vpop.f32.mrf.mxu0
  %v257 = vadd.f32 0.0, %v256
  %258 = vdwg.mxu0
  %v260 = vsel %vm141, %v118, 0
  %v263 = vsel %vm141, %v119, 0
  %v266 = vsel %vm141, %v120, 0
  %v269 = vsel %vm141, %v121, 0
  %v272 = vsel %vm141, %v122, 0
  %v275 = vsel %vm157, %v127, 0
  %v278 = vsel %vm157, %v128, 0
  %280 = vmatprep.subr.mxu0 0.0
  %281 = vmatpush1.msra.mxu0 0.0
  %282 = vmatprep.subr.mxu0 0.0
  %283 = vmatpush1.msra.mxu0 0.0
  %284 = vmatprep.subr.mxu0 0.0
  %285 = vmatpush1.msra.mxu0 0.0
  %286 = vmatprep.subr.mxu0 0.0
  %287 = vmatpush1.msra.mxu0 0.0
  %288 = vmatprep.subr.mxu0 0.0
  %289 = vmatpush1.msra.mxu0 0.0
  %290 = vmatprep.subr.mxu0 0.0
  %291 = vmatpush1.msra.mxu0 0.0
  %292 = vmatprep.subr.mxu0 0.0
  %293 = vmatpush1.msra.mxu0 0.0
  %294 = vmatprep.subr.mxu0 0.0
  %295 = vmatpush1.msra.mxu0 0.0
  %296 = vmatprep.subr.mxu0 0.0
  %297 = vmatpush1.msra.mxu0 0.0
  %298 = vmatprep.subr.mxu0 0.0
  %299 = vmatpush1.msra.mxu0 0.0
  %300 = vmatprep.subr.mxu0 0.0
  %301 = vmatpush1.msra.mxu0 0.0
  %302 = vmatprep.subr.mxu0 0.0
  %303 = vmatpush1.msra.mxu0 0.0
  %304 = vmatprep.subr.mxu0 0.0
  %305 = vmatpush1.msra.mxu0 0.0
  %306 = vmatprep.subr.mxu0 %v278
  %307 = vmatpush1.msra.mxu0 %v275
  %308 = vmatprep.subr.mxu0 %v126
  %309 = vmatpush1.msra.mxu0 %v125
  %310 = vmatprep.subr.mxu0 %v124
  %311 = vmatpush1.msra.mxu0 %v123
  %312 = vmatprep.subr.mxu0 0.0
  %313 = vmatpush2.msra.mxu0 0.0
  %314 = vmatprep.subr.mxu0 0.0
  %315 = vmatpush2.msra.mxu0 0.0
  %316 = vmatprep.subr.mxu0 0.0
  %317 = vmatpush2.msra.mxu0 0.0
  %318 = vmatprep.subr.mxu0 0.0
  %319 = vmatpush2.msra.mxu0 0.0
  %320 = vmatprep.subr.mxu0 0.0
  %321 = vmatpush2.msra.mxu0 0.0
  %322 = vmatprep.subr.mxu0 0.0
  %323 = vmatpush2.msra.mxu0 0.0
  %324 = vmatprep.subr.mxu0 0.0
  %325 = vmatpush2.msra.mxu0 0.0
  %326 = vmatprep.subr.mxu0 0.0
  %327 = vmatpush2.msra.mxu0 0.0
  %328 = vmatprep.subr.mxu0 0.0
  %329 = vmatpush2.msra.mxu0 0.0
  %330 = vmatprep.subr.mxu0 0.0
  %331 = vmatpush2.msra.mxu0 0.0
  %332 = vmatprep.subr.mxu0 0.0
  %333 = vmatpush2.msra.mxu0 0.0
  %334 = vmatprep.subr.mxu0 0.0
  %335 = vmatpush2.msra.mxu0 0.0
  %336 = vmatprep.subr.mxu0 0.0
  %337 = vmatpush2.msra.mxu0 0.0
  %338 = vmatprep.subr.mxu0 0.0
  %339 = vmatpush2.msra.mxu0 0.0
  %340 = vmatprep.subr.mxu0 0.0
  %341 = vmatpush2.msra.mxu0 0.0
  %342 = vmatprep.subr.mxu0 0.0
  %343 = vmatpush2.msra.mxu0 0.0
  %344 = vmatprep.mubr.f32.mxu0 0.0
  %345 = vmatmul.mubr.f32.gmra.mxu0 %v260
  %v346 = vpop.f32.mrf.mxu0
  %v347 = vadd.f32 %v231, %v346
  %v348 = vpop.f32.mrf.mxu0
  %v349 = vadd.f32 %v233, %v348
  %350 = vmatprep.mubr.f32.mxu0 0.0
  %351 = vmatmul.mubr.f32.gmra.mxu0 %v263
  %v352 = vpop.f32.mrf.mxu0
  %v353 = vadd.f32 %v237, %v352
  %v354 = vpop.f32.mrf.mxu0
  %v355 = vadd.f32 %v239, %v354
  %356 = vmatprep.mubr.f32.mxu0 0.0
  %357 = vmatmul.mubr.f32.gmra.mxu0 %v266
  %v358 = vpop.f32.mrf.mxu0
  %v359 = vadd.f32 %v243, %v358
  %v360 = vpop.f32.mrf.mxu0
  %v361 = vadd.f32 %v245, %v360
  %362 = vmatprep.mubr.f32.mxu0 0.0
  %363 = vmatmul.mubr.f32.gmra.mxu0 %v269
  %v364 = vpop.f32.mrf.mxu0
  %v365 = vadd.f32 %v249, %v364
  %v366 = vpop.f32.mrf.mxu0
  %v367 = vadd.f32 %v251, %v366
  %368 = vmatprep.mubr.f32.mxu0 0.0
  %369 = vmatmul.mubr.f32.gmra.mxu0 %v272
  %v370 = vpop.f32.mrf.mxu0
  %v371 = vadd.f32 %v255, %v370
  %v372 = vpop.f32.mrf.mxu0
  %v373 = vadd.f32 %v257, %v372
  %374 = vdwg.mxu0
  %v375 = vld [vmem:[#allocation3 + $0x2] sm:$0xff]
  %v376 = vld [vmem:[#allocation3 + $0xa] sm:$0xff]
  %v377 = vld [vmem:[#allocation3 + $0x12] sm:$0xff]
  %v378 = vld [vmem:[#allocation3 + $0x1a] sm:$0xff]
  %v379 = vld [vmem:[#allocation3 + $0x22] sm:$0x3]
  %s380 = scalar_lea.vmem %s1, 96
  %v381 = vld [vmem:[%s380] sm:$0xff]
  %v382 = vld [vmem:[%s380 + $0x8] sm:$0xff]
  %v383 = vld [vmem:[%s380 + $0x10] sm:$0xff]
  %v384 = vld [vmem:[%s380 + $0x18] sm:$0xff]
  %v385 = vld [vmem:[%s380 + $0x20] sm:$0x3]
  %v386 = vld [vmem:[%s380 + $0x28] sm:$0x3]
  %v388 = vsel %vm141, %v375, 0
  %v391 = vsel %vm141, %v376, 0
  %v394 = vsel %vm141, %v377, 0
  %v397 = vsel %vm141, %v378, 0
  %v400 = vsel %vm141, %v379, 0
  %v403 = vsel %vm157, %v385, 0
  %v406 = vsel %vm157, %v386, 0
  %408 = vmatprep.subr.mxu0 0.0
  %409 = vmatpush1.msra.mxu0 0.0
  %410 = vmatprep.subr.mxu0 0.0
  %411 = vmatpush1.msra.mxu0 0.0
  %412 = vmatprep.subr.mxu0 0.0
  %413 = vmatpush1.msra.mxu0 0.0
  %414 = vmatprep.subr.mxu0 0.0
  %415 = vmatpush1.msra.mxu0 0.0
  %416 = vmatprep.subr.mxu0 0.0
  %417 = vmatpush1.msra.mxu0 0.0
  %418 = vmatprep.subr.mxu0 0.0
  %419 = vmatpush1.msra.mxu0 0.0
  %420 = vmatprep.subr.mxu0 0.0
  %421 = vmatpush1.msra.mxu0 0.0
  %422 = vmatprep.subr.mxu0 0.0
  %423 = vmatpush1.msra.mxu0 0.0
  %424 = vmatprep.subr.mxu0 0.0
  %425 = vmatpush1.msra.mxu0 0.0
  %426 = vmatprep.subr.mxu0 0.0
  %427 = vmatpush1.msra.mxu0 0.0
  %428 = vmatprep.subr.mxu0 0.0
  %429 = vmatpush1.msra.mxu0 0.0
  %430 = vmatprep.subr.mxu0 0.0
  %431 = vmatpush1.msra.mxu0 0.0
  %432 = vmatprep.subr.mxu0 0.0
  %433 = vmatpush1.msra.mxu0 0.0
  %434 = vmatprep.subr.mxu0 %v406
  %435 = vmatpush1.msra.mxu0 %v403
  %436 = vmatprep.subr.mxu0 %v384
  %437 = vmatpush1.msra.mxu0 %v383
  %438 = vmatprep.subr.mxu0 %v382
  %439 = vmatpush1.msra.mxu0 %v381
  %440 = vmatprep.subr.mxu0 0.0
  %441 = vmatpush2.msra.mxu0 0.0
  %442 = vmatprep.subr.mxu0 0.0
  %443 = vmatpush2.msra.mxu0 0.0
  %444 = vmatprep.subr.mxu0 0.0
  %445 = vmatpush2.msra.mxu0 0.0
  %446 = vmatprep.subr.mxu0 0.0
  %447 = vmatpush2.msra.mxu0 0.0
  %448 = vmatprep.subr.mxu0 0.0
  %449 = vmatpush2.msra.mxu0 0.0
  %450 = vmatprep.subr.mxu0 0.0
  %451 = vmatpush2.msra.mxu0 0.0
  %452 = vmatprep.subr.mxu0 0.0
  %453 = vmatpush2.msra.mxu0 0.0
  %454 = vmatprep.subr.mxu0 0.0
  %455 = vmatpush2.msra.mxu0 0.0
  %456 = vmatprep.subr.mxu0 0.0
  %457 = vmatpush2.msra.mxu0 0.0
  %458 = vmatprep.subr.mxu0 0.0
  %459 = vmatpush2.msra.mxu0 0.0
  %460 = vmatprep.subr.mxu0 0.0
  %461 = vmatpush2.msra.mxu0 0.0
  %462 = vmatprep.subr.mxu0 0.0
  %463 = vmatpush2.msra.mxu0 0.0
  %464 = vmatprep.subr.mxu0 0.0
  %465 = vmatpush2.msra.mxu0 0.0
  %466 = vmatprep.subr.mxu0 0.0
  %467 = vmatpush2.msra.mxu0 0.0
  %468 = vmatprep.subr.mxu0 0.0
  %469 = vmatpush2.msra.mxu0 0.0
  %470 = vmatprep.subr.mxu0 0.0
  %471 = vmatpush2.msra.mxu0 0.0
  %472 = vmatprep.mubr.f32.mxu0 0.0
  %473 = vmatmul.mubr.f32.gmra.mxu0 %v388
  %v474 = vpop.f32.mrf.mxu0
  %v475 = vadd.f32 0.0, %v474
  %v476 = vpop.f32.mrf.mxu0
  %v477 = vadd.f32 0.0, %v476
  %478 = vmatprep.mubr.f32.mxu0 0.0
  %479 = vmatmul.mubr.f32.gmra.mxu0 %v391
  %v480 = vpop.f32.mrf.mxu0
  %v481 = vadd.f32 0.0, %v480
  %v482 = vpop.f32.mrf.mxu0
  %v483 = vadd.f32 0.0, %v482
  %484 = vmatprep.mubr.f32.mxu0 0.0
  %485 = vmatmul.mubr.f32.gmra.mxu0 %v394
  %v486 = vpop.f32.mrf.mxu0
  %v487 = vadd.f32 0.0, %v486
  %v488 = vpop.f32.mrf.mxu0
  %v489 = vadd.f32 0.0, %v488
  %490 = vmatprep.mubr.f32.mxu0 0.0
  %491 = vmatmul.mubr.f32.gmra.mxu0 %v397
  %v492 = vpop.f32.mrf.mxu0
  %v493 = vadd.f32 0.0, %v492
  %v494 = vpop.f32.mrf.mxu0
  %v495 = vadd.f32 0.0, %v494
  %496 = vmatprep.mubr.f32.mxu0 0.0
  %497 = vmatmul.mubr.f32.gmra.mxu0 %v400
  %v498 = vpop.f32.mrf.mxu0
  %v499 = vadd.f32 0.0, %v498
  %v500 = vpop.f32.mrf.mxu0
  %v501 = vadd.f32 0.0, %v500
  %502 = vdwg.mxu0
  %v503 = vadd.f32 %v347, %v475
  %v504 = vadd.f32 %v349, %v477
  %v505 = vadd.f32 %v353, %v481
  %v506 = vadd.f32 %v355, %v483
  %v507 = vadd.f32 %v359, %v487
  %v508 = vadd.f32 %v361, %v489
  %v509 = vadd.f32 %v365, %v493
  %v510 = vadd.f32 %v367, %v495
  %v511 = vadd.f32 %v371, %v499
  %v512 = vadd.f32 %v373, %v501
  %v513 = vmax.f32 %v503, %v504
  %v514 = vmax.f32 %v505, %v506
  %v515 = vmax.f32 %v507, %v508
  %v516 = vmax.f32 %v509, %v510
  %v517 = vmax.f32 %v511, %v512
  %518 = vst [vmem:[#allocation2] sm:$0xff] %v513
  %519 = vst [vmem:[#allocation2 + $0x8] sm:$0xff] %v514
  %520 = vst [vmem:[#allocation2 + $0x10] sm:$0xff] %v515
  %521 = vst [vmem:[#allocation2 + $0x18] sm:$0xff] %v516
  %522 = vst [vmem:[#allocation2 + $0x20] sm:$0x3] %v517
  %v524 = vlaneseq
  %v525 = vshrl.u32 %v524, 7
  %v526 = vsub.s32 0, %v525
  %v527 = vrot.slane %v117, %v526
  %v529 = vld [vmem:[#allocation2] ss:$2 sm:$0xff]
  %s530 = scalar_lea.vmem [#allocation2], 1
  %v531 = vld [vmem:[%s530] ss:$2 sm:$0xff]
  %v532 = vmax.f32 %v529, %v531
  %v533 = vadd.f32 %v532, %v527
  %v534 = vmax.f32 %v533, 0.0
  %v536 = vrot.slane %v534, 7
  %537 = vrot.lane.b32.xlu0 %v536, 16
  %v538 = vpop.permute.xlu0 %537
  %vm540 = vcmask 1047681
  %541 = vst.msk [vmem:[#allocation4] sm:$0xfe] %vm540, %v538
  %vm542 = vcmask 130049
  %543 = vst.msk [vmem:[#allocation4 + $0x8] sm:$0xfe] %vm542, %v538
  %vm544 = vcmask 1040512
  %545 = vst.msk [vmem:[#allocation4 + $0x10] sm:$0x1] %vm544, %v538
  %vm546 = vcmask 122880
  %547 = vst.msk [vmem:[#allocation4 + $0x18] sm:$0x1] %vm546, %v538
  %s548 = scalar_lea.vmem [#allocation2], 18
  %v549 = vld [vmem:[%s548] ss:$2 sm:$0xff]
  %s550 = scalar_lea.vmem [#allocation2], 19
  %v551 = vld [vmem:[%s550] ss:$2 sm:$0xff]
  %v552 = vmax.f32 %v549, %v551
  %v553 = vadd.f32 %v552, %v527
  %v554 = vmax.f32 %v553, 0.0
  %v556 = vrot.slane %v554, 5
  %557 = vrot.lane.b32.xlu0 %v556, 16
  %v558 = vpop.permute.xlu0 %557
  %vm560 = vcmask 1047683
  %561 = vst.msk [vmem:[#allocation4 + $0x10] sm:$0xf8] %vm560, %v558
  %vm562 = vcmask 130051
  %563 = vst.msk [vmem:[#allocation4 + $0x18] sm:$0xf8] %vm562, %v558
  %vm564 = vcmask 1042560
  %565 = vst.msk [vmem:[#allocation4 + $0x20] sm:$0x7] %vm564, %v558
  %vm566 = vcmask 124928
  %567 = vst.msk [vmem:[#allocation4 + $0x28] sm:$0x7] %vm566, %v558
  %v568 = vld [vmem:[%s4] sm:$0x1]
  %v569 = vld [vmem:[#allocation4] sm:$0xff]
  %v570 = vld [vmem:[#allocation4 + $0x8] sm:$0xff]
  %v571 = vld [vmem:[#allocation4 + $0x10] sm:$0xff]
  %v572 = vld [vmem:[#allocation4 + $0x18] sm:$0xff]
  %v573 = vld [vmem:[#allocation4 + $0x20] sm:$0x3]
  %v574 = vld [vmem:[#allocation4 + $0x28] sm:$0x3]
  %v575 = vld [vmem:[%s3] sm:$0xff]
  %v576 = vld [vmem:[%s3 + $0x8] sm:$0xff]
  %v577 = vld [vmem:[%s3 + $0x10] sm:$0xff]
  %v578 = vld [vmem:[%s3 + $0x18] sm:$0xff]
  %v579 = vld [vmem:[%s3 + $0x20] sm:$0xff]
  %v580 = vld [vmem:[%s3 + $0x28] sm:$0xff]
  %v581 = vld [vmem:[%s3 + $0x30] sm:$0xff]
  %v582 = vld [vmem:[%s3 + $0x38] sm:$0xff]
  %v583 = vld [vmem:[%s3 + $0x40] sm:$0xff]
  %v584 = vld [vmem:[%s3 + $0x48] sm:$0xff]
  %v585 = vld [vmem:[%s3 + $0x50] sm:$0xff]
  %v586 = vld [vmem:[%s3 + $0x58] sm:$0xff]
  %v587 = vld [vmem:[%s3 + $0x60] sm:$0xff]
  %v588 = vld [vmem:[%s3 + $0x68] sm:$0xff]
  %v589 = vld [vmem:[%s3 + $0x70] sm:$0xff]
  %v590 = vld [vmem:[%s3 + $0x78] sm:$0xff]
  %v591 = vld [vmem:[%s3 + $0x80] sm:$0xff]
  %v592 = vld [vmem:[%s3 + $0x88] sm:$0xff]
  %v593 = vld [vmem:[%s3 + $0x90] sm:$0xff]
  %v594 = vld [vmem:[%s3 + $0x98] sm:$0xff]
  %v595 = vld [vmem:[%s3 + $0xa0] sm:$0xff]
  %v596 = vld [vmem:[%s3 + $0xa8] sm:$0xff]
  %v597 = vld [vmem:[%s3 + $0xb0] sm:$0xff]
  %v598 = vld [vmem:[%s3 + $0xb8] sm:$0xff]
  %v599 = vld [vmem:[%s3 + $0xc0] sm:$0xff]
  %v600 = vld [vmem:[%s3 + $0xc8] sm:$0xff]
  %v601 = vld [vmem:[%s3 + $0xd0] sm:$0xff]
  %v602 = vld [vmem:[%s3 + $0xd8] sm:$0xff]
  %v603 = vld [vmem:[%s3 + $0xe0] sm:$0xff]
  %v604 = vld [vmem:[%s3 + $0xe8] sm:$0xff]
  %v605 = vld [vmem:[%s3 + $0xf0] sm:$0xff]
  %v606 = vld [vmem:[%s3 + $0xf8] sm:$0xff]
  %v607 = vld [vmem:[%s3 + $0x100] sm:$0xff]
  %v608 = vld [vmem:[%s3 + $0x108] sm:$0xff]
  %v609 = vld [vmem:[%s3 + $0x110] sm:$0xff]
  %v610 = vld [vmem:[%s3 + $0x118] sm:$0xff]
  %v611 = vld [vmem:[%s3 + $0x120] sm:$0xff]
  %v612 = vld [vmem:[%s3 + $0x128] sm:$0xff]
  %v613 = vld [vmem:[%s3 + $0x130] sm:$0xff]
  %v614 = vld [vmem:[%s3 + $0x138] sm:$0xff]
  %v615 = vld [vmem:[#allocation4] sm:$0xfe]
  %v616 = vld [vmem:[#allocation4 + $0x8] sm:$0xfe]
  %v617 = vld [vmem:[#allocation4 + $0x20] sm:$0x7]
  %v618 = vld [vmem:[#allocation4 + $0x28] sm:$0x7]
  %s619 = scalar_lea.vmem %s3, 320
  %v620 = vld [vmem:[%s619] sm:$0xff]
  %v621 = vld [vmem:[%s619 + $0x8] sm:$0xff]
  %v622 = vld [vmem:[%s619 + $0x10] sm:$0xff]
  %v623 = vld [vmem:[%s619 + $0x18] sm:$0xff]
  %v624 = vld [vmem:[%s619 + $0x20] sm:$0xff]
  %v625 = vld [vmem:[%s619 + $0x28] sm:$0xff]
  %v626 = vld [vmem:[%s619 + $0x30] sm:$0xff]
  %v627 = vld [vmem:[%s619 + $0x38] sm:$0xff]
  %v628 = vld [vmem:[%s619 + $0x40] sm:$0xff]
  %v629 = vld [vmem:[%s619 + $0x48] sm:$0xff]
  %v630 = vld [vmem:[%s619 + $0x50] sm:$0xff]
  %v631 = vld [vmem:[%s619 + $0x58] sm:$0xff]
  %v632 = vld [vmem:[%s619 + $0x60] sm:$0xff]
  %v633 = vld [vmem:[%s619 + $0x68] sm:$0xff]
  %v634 = vld [vmem:[%s619 + $0x70] sm:$0xff]
  %v635 = vld [vmem:[%s619 + $0x78] sm:$0xff]
  %v636 = vld [vmem:[%s619 + $0x80] sm:$0xff]
  %v637 = vld [vmem:[%s619 + $0x88] sm:$0xff]
  %v638 = vld [vmem:[%s619 + $0x90] sm:$0xff]
  %v639 = vld [vmem:[%s619 + $0x98] sm:$0xff]
  %v640 = vld [vmem:[%s619 + $0xa0] sm:$0xff]
  %v641 = vld [vmem:[%s619 + $0xa8] sm:$0xff]
  %v642 = vld [vmem:[%s619 + $0xb0] sm:$0xff]
  %v643 = vld [vmem:[%s619 + $0xb8] sm:$0xff]
  %v644 = vld [vmem:[%s619 + $0xc0] sm:$0xff]
  %v645 = vld [vmem:[%s619 + $0xc8] sm:$0xff]
  %v646 = vld [vmem:[%s619 + $0xd0] sm:$0xff]
  %v647 = vld [vmem:[%s619 + $0xd8] sm:$0xff]
  %v648 = vld [vmem:[%s619 + $0xe0] sm:$0xff]
  %v649 = vld [vmem:[%s619 + $0xe8] sm:$0xff]
  %v650 = vld [vmem:[%s619 + $0xf0] sm:$0xff]
  %v651 = vld [vmem:[%s619 + $0xf8] sm:$0xff]
  %v652 = vld [vmem:[%s619 + $0x100] sm:$0xff]
  %v653 = vld [vmem:[%s619 + $0x108] sm:$0xff]
  %v654 = vld [vmem:[%s619 + $0x110] sm:$0xff]
  %v655 = vld [vmem:[%s619 + $0x118] sm:$0xff]
  %v656 = vld [vmem:[%s619 + $0x120] sm:$0xff]
  %v657 = vld [vmem:[%s619 + $0x128] sm:$0xff]
  %v658 = vld [vmem:[%s619 + $0x130] sm:$0xff]
  %v659 = vld [vmem:[%s619 + $0x138] sm:$0xff]
  %vm666 = vcmask 1046528
  %v667 = vrot.slane %v615, 1
  %v668 = vrot.slane %v571, 1
  %v669 = vsel %vm666, %v667, %v668
  %v670 = vrot.slane %v616, 1
  %v671 = vrot.slane %v572, 1
  %v672 = vsel %vm666, %v670, %v671
  %v673 = vrot.slane %v617, 1
  %v674 = vsel %vm666, %v668, %v673
  %v675 = vrot.slane %v618, 1
  %v676 = vsel %vm666, %v671, %v675
  %v680 = vsel %vm70, %v672, 0
  %v682 = vsel %vm70, %v676, 0
  %v684 = vsel %vm70, %v675, 0
  %686 = vmatprep.subr.mxu0 %v651
  %687 = vmatpush1.msra.mxu0 %v650
  %688 = vmatprep.subr.mxu0 %v649
  %689 = vmatpush1.msra.mxu0 %v648
  %690 = vmatprep.subr.mxu0 %v647
  %691 = vmatpush1.msra.mxu0 %v646
  %692 = vmatprep.subr.mxu0 %v645
  %693 = vmatpush1.msra.mxu0 %v644
  %694 = vmatprep.subr.mxu0 %v643
  %695 = vmatpush1.msra.mxu0 %v642
  %696 = vmatprep.subr.mxu0 %v641
  %697 = vmatpush1.msra.mxu0 %v640
  %698 = vmatprep.subr.mxu0 %v639
  %699 = vmatpush1.msra.mxu0 %v638
  %700 = vmatprep.subr.mxu0 %v637
  %701 = vmatpush1.msra.mxu0 %v636
  %702 = vmatprep.subr.mxu0 %v635
  %703 = vmatpush1.msra.mxu0 %v634
  %704 = vmatprep.subr.mxu0 %v633
  %705 = vmatpush1.msra.mxu0 %v632
  %706 = vmatprep.subr.mxu0 %v631
  %707 = vmatpush1.msra.mxu0 %v630
  %708 = vmatprep.subr.mxu0 %v629
  %709 = vmatpush1.msra.mxu0 %v628
  %710 = vmatprep.subr.mxu0 %v627
  %711 = vmatpush1.msra.mxu0 %v626
  %712 = vmatprep.subr.mxu0 %v625
  %713 = vmatpush1.msra.mxu0 %v624
  %714 = vmatprep.subr.mxu0 %v623
  %715 = vmatpush1.msra.mxu0 %v622
  %716 = vmatprep.subr.mxu0 %v621
  %717 = vmatpush1.msra.mxu0 %v620
  %718 = vmatprep.subr.mxu0 0.0
  %719 = vmatpush2.msra.mxu0 0.0
  %720 = vmatprep.subr.mxu0 0.0
  %721 = vmatpush2.msra.mxu0 0.0
  %722 = vmatprep.subr.mxu0 0.0
  %723 = vmatpush2.msra.mxu0 0.0
  %724 = vmatprep.subr.mxu0 0.0
  %725 = vmatpush2.msra.mxu0 0.0
  %726 = vmatprep.subr.mxu0 0.0
  %727 = vmatpush2.msra.mxu0 0.0
  %728 = vmatprep.subr.mxu0 0.0
  %729 = vmatpush2.msra.mxu0 0.0
  %730 = vmatprep.subr.mxu0 0.0
  %731 = vmatpush2.msra.mxu0 0.0
  %732 = vmatprep.subr.mxu0 0.0
  %733 = vmatpush2.msra.mxu0 0.0
  %734 = vmatprep.subr.mxu0 0.0
  %735 = vmatpush2.msra.mxu0 0.0
  %736 = vmatprep.subr.mxu0 0.0
  %737 = vmatpush2.msra.mxu0 0.0
  %738 = vmatprep.subr.mxu0 0.0
  %739 = vmatpush2.msra.mxu0 0.0
  %740 = vmatprep.subr.mxu0 0.0
  %741 = vmatpush2.msra.mxu0 0.0
  %742 = vmatprep.subr.mxu0 %v659
  %743 = vmatpush2.msra.mxu0 %v658
  %744 = vmatprep.subr.mxu0 %v657
  %745 = vmatpush2.msra.mxu0 %v656
  %746 = vmatprep.subr.mxu0 %v655
  %747 = vmatpush2.msra.mxu0 %v654
  %748 = vmatprep.subr.mxu0 %v653
  %749 = vmatpush2.msra.mxu0 %v652
  %750 = vmatprep.mubr.f32.mxu0 %v680
  %751 = vmatmul.mubr.f32.gmra.mxu0 %v669
  %v752 = vpop.f32.mrf.mxu0
  %v753 = vadd.f32 0.0, %v752
  %v754 = vpop.f32.mrf.mxu0
  %v755 = vadd.f32 0.0, %v754
  %756 = vmatprep.mubr.f32.mxu0 %v682
  %757 = vmatmul.mubr.f32.gmra.mxu0 %v674
  %v758 = vpop.f32.mrf.mxu0
  %v759 = vadd.f32 0.0, %v758
  %v760 = vpop.f32.mrf.mxu0
  %v761 = vadd.f32 0.0, %v760
  %762 = vmatprep.mubr.f32.mxu0 %v684
  %763 = vmatmul.mubr.f32.gmra.mxu0 %v673
  %v764 = vpop.f32.mrf.mxu0
  %v765 = vadd.f32 0.0, %v764
  %v766 = vpop.f32.mrf.mxu0
  %v767 = vadd.f32 0.0, %v766
  %768 = vdwg.mxu0
  %v770 = vsel %vm70, %v570, 0
  %v772 = vsel %vm70, %v572, 0
  %v775 = vsel %vm70, %v574, 0
  %777 = vmatprep.subr.mxu0 %v606
  %778 = vmatpush1.msra.mxu0 %v605
  %779 = vmatprep.subr.mxu0 %v604
  %780 = vmatpush1.msra.mxu0 %v603
  %781 = vmatprep.subr.mxu0 %v602
  %782 = vmatpush1.msra.mxu0 %v601
  %783 = vmatprep.subr.mxu0 %v600
  %784 = vmatpush1.msra.mxu0 %v599
  %785 = vmatprep.subr.mxu0 %v598
  %786 = vmatpush1.msra.mxu0 %v597
  %787 = vmatprep.subr.mxu0 %v596
  %788 = vmatpush1.msra.mxu0 %v595
  %789 = vmatprep.subr.mxu0 %v594
  %790 = vmatpush1.msra.mxu0 %v593
  %791 = vmatprep.subr.mxu0 %v592
  %792 = vmatpush1.msra.mxu0 %v591
  %793 = vmatprep.subr.mxu0 %v590
  %794 = vmatpush1.msra.mxu0 %v589
  %795 = vmatprep.subr.mxu0 %v588
  %796 = vmatpush1.msra.mxu0 %v587
  %797 = vmatprep.subr.mxu0 %v586
  %798 = vmatpush1.msra.mxu0 %v585
  %799 = vmatprep.subr.mxu0 %v584
  %800 = vmatpush1.msra.mxu0 %v583
  %801 = vmatprep.subr.mxu0 %v582
  %802 = vmatpush1.msra.mxu0 %v581
  %803 = vmatprep.subr.mxu0 %v580
  %804 = vmatpush1.msra.mxu0 %v579
  %805 = vmatprep.subr.mxu0 %v578
  %806 = vmatpush1.msra.mxu0 %v577
  %807 = vmatprep.subr.mxu0 %v576
  %808 = vmatpush1.msra.mxu0 %v575
  %809 = vmatprep.subr.mxu0 0.0
  %810 = vmatpush2.msra.mxu0 0.0
  %811 = vmatprep.subr.mxu0 0.0
  %812 = vmatpush2.msra.mxu0 0.0
  %813 = vmatprep.subr.mxu0 0.0
  %814 = vmatpush2.msra.mxu0 0.0
  %815 = vmatprep.subr.mxu0 0.0
  %816 = vmatpush2.msra.mxu0 0.0
  %817 = vmatprep.subr.mxu0 0.0
  %818 = vmatpush2.msra.mxu0 0.0
  %819 = vmatprep.subr.mxu0 0.0
  %820 = vmatpush2.msra.mxu0 0.0
  %821 = vmatprep.subr.mxu0 0.0
  %822 = vmatpush2.msra.mxu0 0.0
  %823 = vmatprep.subr.mxu0 0.0
  %824 = vmatpush2.msra.mxu0 0.0
  %825 = vmatprep.subr.mxu0 0.0
  %826 = vmatpush2.msra.mxu0 0.0
  %827 = vmatprep.subr.mxu0 0.0
  %828 = vmatpush2.msra.mxu0 0.0
  %829 = vmatprep.subr.mxu0 0.0
  %830 = vmatpush2.msra.mxu0 0.0
  %831 = vmatprep.subr.mxu0 0.0
  %832 = vmatpush2.msra.mxu0 0.0
  %833 = vmatprep.subr.mxu0 %v614
  %834 = vmatpush2.msra.mxu0 %v613
  %835 = vmatprep.subr.mxu0 %v612
  %836 = vmatpush2.msra.mxu0 %v611
  %837 = vmatprep.subr.mxu0 %v610
  %838 = vmatpush2.msra.mxu0 %v609
  %839 = vmatprep.subr.mxu0 %v608
  %840 = vmatpush2.msra.mxu0 %v607
  %841 = vmatprep.mubr.f32.mxu0 %v770
  %842 = vmatmul.mubr.f32.gmra.mxu0 %v569
  %v843 = vpop.f32.mrf.mxu0
  %v844 = vadd.f32 %v753, %v843
  %v845 = vpop.f32.mrf.mxu0
  %v846 = vadd.f32 %v755, %v845
  %847 = vmatprep.mubr.f32.mxu0 %v772
  %848 = vmatmul.mubr.f32.gmra.mxu0 %v571
  %v849 = vpop.f32.mrf.mxu0
  %v850 = vadd.f32 %v759, %v849
  %v851 = vpop.f32.mrf.mxu0
  %v852 = vadd.f32 %v761, %v851
  %853 = vmatprep.mubr.f32.mxu0 %v775
  %854 = vmatmul.mubr.f32.gmra.mxu0 %v573
  %v855 = vpop.f32.mrf.mxu0
  %v856 = vadd.f32 %v765, %v855
  %v857 = vpop.f32.mrf.mxu0
  %v858 = vadd.f32 %v767, %v857
  %859 = vdwg.mxu0
  %v860 = vld [vmem:[#allocation4] sm:$0xfc]
  %v861 = vld [vmem:[#allocation4 + $0x8] sm:$0xfc]
  %v862 = vld [vmem:[#allocation4 + $0x20] sm:$0xf]
  %v863 = vld [vmem:[#allocation4 + $0x28] sm:$0xf]
  %s864 = scalar_lea.vmem %s3, 640
  %v865 = vld [vmem:[%s864] sm:$0xff]
  %v866 = vld [vmem:[%s864 + $0x8] sm:$0xff]
  %v867 = vld [vmem:[%s864 + $0x10] sm:$0xff]
  %v868 = vld [vmem:[%s864 + $0x18] sm:$0xff]
  %v869 = vld [vmem:[%s864 + $0x20] sm:$0xff]
  %v870 = vld [vmem:[%s864 + $0x28] sm:$0xff]
  %v871 = vld [vmem:[%s864 + $0x30] sm:$0xff]
  %v872 = vld [vmem:[%s864 + $0x38] sm:$0xff]
  %v873 = vld [vmem:[%s864 + $0x40] sm:$0xff]
  %v874 = vld [vmem:[%s864 + $0x48] sm:$0xff]
  %v875 = vld [vmem:[%s864 + $0x50] sm:$0xff]
  %v876 = vld [vmem:[%s864 + $0x58] sm:$0xff]
  %v877 = vld [vmem:[%s864 + $0x60] sm:$0xff]
  %v878 = vld [vmem:[%s864 + $0x68] sm:$0xff]
  %v879 = vld [vmem:[%s864 + $0x70] sm:$0xff]
  %v880 = vld [vmem:[%s864 + $0x78] sm:$0xff]
  %v881 = vld [vmem:[%s864 + $0x80] sm:$0xff]
  %v882 = vld [vmem:[%s864 + $0x88] sm:$0xff]
  %v883 = vld [vmem:[%s864 + $0x90] sm:$0xff]
  %v884 = vld [vmem:[%s864 + $0x98] sm:$0xff]
  %v885 = vld [vmem:[%s864 + $0xa0] sm:$0xff]
  %v886 = vld [vmem:[%s864 + $0xa8] sm:$0xff]
  %v887 = vld [vmem:[%s864 + $0xb0] sm:$0xff]
  %v888 = vld [vmem:[%s864 + $0xb8] sm:$0xff]
  %v889 = vld [vmem:[%s864 + $0xc0] sm:$0xff]
  %v890 = vld [vmem:[%s864 + $0xc8] sm:$0xff]
  %v891 = vld [vmem:[%s864 + $0xd0] sm:$0xff]
  %v892 = vld [vmem:[%s864 + $0xd8] sm:$0xff]
  %v893 = vld [vmem:[%s864 + $0xe0] sm:$0xff]
  %v894 = vld [vmem:[%s864 + $0xe8] sm:$0xff]
  %v895 = vld [vmem:[%s864 + $0xf0] sm:$0xff]
  %v896 = vld [vmem:[%s864 + $0xf8] sm:$0xff]
  %v897 = vld [vmem:[%s864 + $0x100] sm:$0xff]
  %v898 = vld [vmem:[%s864 + $0x108] sm:$0xff]
  %v899 = vld [vmem:[%s864 + $0x110] sm:$0xff]
  %v900 = vld [vmem:[%s864 + $0x118] sm:$0xff]
  %v901 = vld [vmem:[%s864 + $0x120] sm:$0xff]
  %v902 = vld [vmem:[%s864 + $0x128] sm:$0xff]
  %v903 = vld [vmem:[%s864 + $0x130] sm:$0xff]
  %v904 = vld [vmem:[%s864 + $0x138] sm:$0xff]
  %vm909 = vcmask 1045504
  %v910 = vrot.slane %v860, 2
  %v911 = vrot.slane %v571, 2
  %v912 = vsel %vm909, %v910, %v911
  %v913 = vrot.slane %v861, 2
  %v914 = vrot.slane %v572, 2
  %v915 = vsel %vm909, %v913, %v914
  %v916 = vrot.slane %v862, 2
  %v917 = vsel %vm909, %v911, %v916
  %v918 = vrot.slane %v863, 2
  %v919 = vsel %vm909, %v914, %v918
  %v923 = vsel %vm70, %v915, 0
  %v925 = vsel %vm70, %v919, 0
  %v927 = vsel %vm70, %v918, 0
  %929 = vmatprep.subr.mxu0 %v896
  %930 = vmatpush1.msra.mxu0 %v895
  %931 = vmatprep.subr.mxu0 %v894
  %932 = vmatpush1.msra.mxu0 %v893
  %933 = vmatprep.subr.mxu0 %v892
  %934 = vmatpush1.msra.mxu0 %v891
  %935 = vmatprep.subr.mxu0 %v890
  %936 = vmatpush1.msra.mxu0 %v889
  %937 = vmatprep.subr.mxu0 %v888
  %938 = vmatpush1.msra.mxu0 %v887
  %939 = vmatprep.subr.mxu0 %v886
  %940 = vmatpush1.msra.mxu0 %v885
  %941 = vmatprep.subr.mxu0 %v884
  %942 = vmatpush1.msra.mxu0 %v883
  %943 = vmatprep.subr.mxu0 %v882
  %944 = vmatpush1.msra.mxu0 %v881
  %945 = vmatprep.subr.mxu0 %v880
  %946 = vmatpush1.msra.mxu0 %v879
  %947 = vmatprep.subr.mxu0 %v878
  %948 = vmatpush1.msra.mxu0 %v877
  %949 = vmatprep.subr.mxu0 %v876
  %950 = vmatpush1.msra.mxu0 %v875
  %951 = vmatprep.subr.mxu0 %v874
  %952 = vmatpush1.msra.mxu0 %v873
  %953 = vmatprep.subr.mxu0 %v872
  %954 = vmatpush1.msra.mxu0 %v871
  %955 = vmatprep.subr.mxu0 %v870
  %956 = vmatpush1.msra.mxu0 %v869
  %957 = vmatprep.subr.mxu0 %v868
  %958 = vmatpush1.msra.mxu0 %v867
  %959 = vmatprep.subr.mxu0 %v866
  %960 = vmatpush1.msra.mxu0 %v865
  %961 = vmatprep.subr.mxu0 0.0
  %962 = vmatpush2.msra.mxu0 0.0
  %963 = vmatprep.subr.mxu0 0.0
  %964 = vmatpush2.msra.mxu0 0.0
  %965 = vmatprep.subr.mxu0 0.0
  %966 = vmatpush2.msra.mxu0 0.0
  %967 = vmatprep.subr.mxu0 0.0
  %968 = vmatpush2.msra.mxu0 0.0
  %969 = vmatprep.subr.mxu0 0.0
  %970 = vmatpush2.msra.mxu0 0.0
  %971 = vmatprep.subr.mxu0 0.0
  %972 = vmatpush2.msra.mxu0 0.0
  %973 = vmatprep.subr.mxu0 0.0
  %974 = vmatpush2.msra.mxu0 0.0
  %975 = vmatprep.subr.mxu0 0.0
  %976 = vmatpush2.msra.mxu0 0.0
  %977 = vmatprep.subr.mxu0 0.0
  %978 = vmatpush2.msra.mxu0 0.0
  %979 = vmatprep.subr.mxu0 0.0
  %980 = vmatpush2.msra.mxu0 0.0
  %981 = vmatprep.subr.mxu0 0.0
  %982 = vmatpush2.msra.mxu0 0.0
  %983 = vmatprep.subr.mxu0 0.0
  %984 = vmatpush2.msra.mxu0 0.0
  %985 = vmatprep.subr.mxu0 %v904
  %986 = vmatpush2.msra.mxu0 %v903
  %987 = vmatprep.subr.mxu0 %v902
  %988 = vmatpush2.msra.mxu0 %v901
  %989 = vmatprep.subr.mxu0 %v900
  %990 = vmatpush2.msra.mxu0 %v899
  %991 = vmatprep.subr.mxu0 %v898
  %992 = vmatpush2.msra.mxu0 %v897
  %993 = vmatprep.mubr.f32.mxu0 %v923
  %994 = vmatmul.mubr.f32.gmra.mxu0 %v912
  %v995 = vpop.f32.mrf.mxu0
  %v996 = vadd.f32 0.0, %v995
  %v997 = vpop.f32.mrf.mxu0
  %v998 = vadd.f32 0.0, %v997
  %999 = vmatprep.mubr.f32.mxu0 %v925
  %1000 = vmatmul.mubr.f32.gmra.mxu0 %v917
  %v1001 = vpop.f32.mrf.mxu0
  %v1002 = vadd.f32 0.0, %v1001
  %v1003 = vpop.f32.mrf.mxu0
  %v1004 = vadd.f32 0.0, %v1003
  %1005 = vmatprep.mubr.f32.mxu0 %v927
  %1006 = vmatmul.mubr.f32.gmra.mxu0 %v916
  %v1007 = vpop.f32.mrf.mxu0
  %v1008 = vadd.f32 0.0, %v1007
  %v1009 = vpop.f32.mrf.mxu0
  %v1010 = vadd.f32 0.0, %v1009
  %1011 = vdwg.mxu0
  %v1012 = vadd.f32 %v844, %v996
  %v1013 = vadd.f32 %v846, %v998
  %v1014 = vadd.f32 %v850, %v1002
  %v1015 = vadd.f32 %v852, %v1004
  %v1016 = vadd.f32 %v856, %v1008
  %v1017 = vadd.f32 %v858, %v1010
  %v1018 = vmax.f32 %v1012, %v1013
  %v1019 = vmax.f32 %v1014, %v1015
  %v1020 = vmax.f32 %v1016, %v1017
  %1021 = vst [vmem:[#allocation2] sm:$0xff] %v1018
  %1022 = vst [vmem:[#allocation2 + $0x8] sm:$0xff] %v1019
  %1023 = vst [vmem:[#allocation2 + $0x10] sm:$0x3] %v1020
  %v1025 = vlaneseq
  %v1026 = vshrl.u32 %v1025, 7
  %v1027 = vsub.s32 0, %v1026
  %v1028 = vrot.slane %v568, %v1027
  %v1030 = vld [vmem:[#allocation2] ss:$2 sm:$0xf]
  %v1031 = vld [vmem:[%s530] ss:$2 sm:$0xf]
  %v1032 = vmax.f32 %v1030, %v1031
  %v1033 = vadd.f32 %v1032, %v1028
  %v1034 = vmax.f32 %v1033, 0.0
  %v1036 = vrot.slane %v1034, 7
  %1037 = vrot.lane.b32.xlu0 %v1036, 32
  %v1038 = vpop.permute.xlu0 %1037
  %vm1040 = vcmask 1044737
  %1041 = vst.msk [vmem:[#allocation5] sm:$0x1e] %vm1040, %v1038
  %vm1042 = vcmask 258049
  %1043 = vst.msk [vmem:[#allocation5 + $0x8] sm:$0x1e] %vm1042, %v1038
  %s1044 = scalar_lea.vmem [#allocation2], 10
  %v1045 = vld [vmem:[%s1044] ss:$2 sm:$0xf]
  %s1046 = scalar_lea.vmem [#allocation2], 11
  %v1047 = vld [vmem:[%s1046] ss:$2 sm:$0xf]
  %v1048 = vmax.f32 %v1045, %v1047
  %v1049 = vadd.f32 %v1048, %v1028
  %v1050 = vmax.f32 %v1049, 0.0
  %v1052 = vrot.slane %v1050, 1
  %1053 = vrot.lane.b32.xlu0 %v1052, 32
  %v1054 = vpop.permute.xlu0 %1053
  %vm1056 = vcmask 1047815
  %1057 = vst.msk [vmem:[#allocation5] sm:$0x80] %vm1056, %v1054
  %vm1058 = vcmask 261127
  %1059 = vst.msk [vmem:[#allocation5 + $0x8] sm:$0x80] %vm1058, %v1054
  %vm1060 = vcmask 1042688
  %1061 = vst.msk [vmem:[#allocation5 + $0x10] sm:$0x7] %vm1060, %v1054
  %vm1062 = vcmask 256000
  %1063 = vst.msk [vmem:[#allocation5 + $0x18] sm:$0x7] %vm1062, %v1054
  %v1064 = vld [vmem:[%s6] sm:$0x1]
  %v1065 = vld [vmem:[#allocation5] sm:$0xff]
  %v1066 = vld [vmem:[#allocation5 + $0x8] sm:$0xff]
  %v1067 = vld [vmem:[#allocation5 + $0x10] sm:$0x3]
  %v1068 = vld [vmem:[#allocation5 + $0x18] sm:$0x3]
  %v1069 = vld [vmem:[%s5] sm:$0xff]
  %v1070 = vld [vmem:[%s5 + $0x8] sm:$0xff]
  %v1071 = vld [vmem:[%s5 + $0x10] sm:$0xff]
  %v1072 = vld [vmem:[%s5 + $0x18] sm:$0xff]
  %v1073 = vld [vmem:[%s5 + $0x20] sm:$0xff]
  %v1074 = vld [vmem:[%s5 + $0x28] sm:$0xff]
  %v1075 = vld [vmem:[%s5 + $0x30] sm:$0xff]
  %v1076 = vld [vmem:[%s5 + $0x38] sm:$0xff]
  %v1077 = vld [vmem:[%s5 + $0x40] sm:$0xff]
  %v1078 = vld [vmem:[%s5 + $0x48] sm:$0xff]
  %v1079 = vld [vmem:[%s5 + $0x50] sm:$0xff]
  %v1080 = vld [vmem:[%s5 + $0x58] sm:$0xff]
  %v1081 = vld [vmem:[%s5 + $0x60] sm:$0xff]
  %v1082 = vld [vmem:[%s5 + $0x68] sm:$0xff]
  %v1083 = vld [vmem:[%s5 + $0x70] sm:$0xff]
  %v1084 = vld [vmem:[%s5 + $0x78] sm:$0xff]
  %v1085 = vld [vmem:[%s5 + $0x80] sm:$0xff]
  %v1086 = vld [vmem:[%s5 + $0x88] sm:$0xff]
  %v1087 = vld [vmem:[%s5 + $0x90] sm:$0xff]
  %v1088 = vld [vmem:[%s5 + $0x98] sm:$0xff]
  %v1089 = vld [vmem:[%s5 + $0xa0] sm:$0xff]
  %v1090 = vld [vmem:[%s5 + $0xa8] sm:$0xff]
  %v1091 = vld [vmem:[%s5 + $0xb0] sm:$0xff]
  %v1092 = vld [vmem:[%s5 + $0xb8] sm:$0xff]
  %v1093 = vld [vmem:[%s5 + $0xc0] sm:$0xff]
  %v1094 = vld [vmem:[%s5 + $0xc8] sm:$0xff]
  %v1095 = vld [vmem:[%s5 + $0xd0] sm:$0xff]
  %v1096 = vld [vmem:[%s5 + $0xd8] sm:$0xff]
  %v1097 = vld [vmem:[%s5 + $0xe0] sm:$0xff]
  %v1098 = vld [vmem:[%s5 + $0xe8] sm:$0xff]
  %v1099 = vld [vmem:[%s5 + $0xf0] sm:$0xff]
  %v1100 = vld [vmem:[%s5 + $0xf8] sm:$0xff]
  %v1101 = vld [vmem:[%s5 + $0x100] sm:$0xff]
  %v1102 = vld [vmem:[%s5 + $0x108] sm:$0xff]
  %v1103 = vld [vmem:[%s5 + $0x110] sm:$0xff]
  %v1104 = vld [vmem:[%s5 + $0x118] sm:$0xff]
  %v1105 = vld [vmem:[%s5 + $0x120] sm:$0xff]
  %v1106 = vld [vmem:[%s5 + $0x128] sm:$0xff]
  %v1107 = vld [vmem:[%s5 + $0x130] sm:$0xff]
  %v1108 = vld [vmem:[%s5 + $0x138] sm:$0xff]
  %v1109 = vld [vmem:[%s5 + $0x140] sm:$0xff]
  %v1110 = vld [vmem:[%s5 + $0x148] sm:$0xff]
  %v1111 = vld [vmem:[%s5 + $0x150] sm:$0xff]
  %v1112 = vld [vmem:[%s5 + $0x158] sm:$0xff]
  %v1113 = vld [vmem:[%s5 + $0x160] sm:$0xff]
  %v1114 = vld [vmem:[%s5 + $0x168] sm:$0xff]
  %v1115 = vld [vmem:[%s5 + $0x170] sm:$0xff]
  %v1116 = vld [vmem:[%s5 + $0x178] sm:$0xff]
  %v1117 = vld [vmem:[#allocation5] sm:$0xfe]
  %v1118 = vld [vmem:[#allocation5 + $0x8] sm:$0xfe]
  %v1119 = vld [vmem:[#allocation5 + $0x10] sm:$0x7]
  %v1120 = vld [vmem:[#allocation5 + $0x18] sm:$0x7]
  %s1121 = scalar_lea.vmem %s5, 384
  %v1122 = vld [vmem:[%s1121] sm:$0xff]
  %v1123 = vld [vmem:[%s1121 + $0x8] sm:$0xff]
  %v1124 = vld [vmem:[%s1121 + $0x10] sm:$0xff]
  %v1125 = vld [vmem:[%s1121 + $0x18] sm:$0xff]
  %v1126 = vld [vmem:[%s1121 + $0x20] sm:$0xff]
  %v1127 = vld [vmem:[%s1121 + $0x28] sm:$0xff]
  %v1128 = vld [vmem:[%s1121 + $0x30] sm:$0xff]
  %v1129 = vld [vmem:[%s1121 + $0x38] sm:$0xff]
  %v1130 = vld [vmem:[%s1121 + $0x40] sm:$0xff]
  %v1131 = vld [vmem:[%s1121 + $0x48] sm:$0xff]
  %v1132 = vld [vmem:[%s1121 + $0x50] sm:$0xff]
  %v1133 = vld [vmem:[%s1121 + $0x58] sm:$0xff]
  %v1134 = vld [vmem:[%s1121 + $0x60] sm:$0xff]
  %v1135 = vld [vmem:[%s1121 + $0x68] sm:$0xff]
  %v1136 = vld [vmem:[%s1121 + $0x70] sm:$0xff]
  %v1137 = vld [vmem:[%s1121 + $0x78] sm:$0xff]
  %v1138 = vld [vmem:[%s1121 + $0x80] sm:$0xff]
  %v1139 = vld [vmem:[%s1121 + $0x88] sm:$0xff]
  %v1140 = vld [vmem:[%s1121 + $0x90] sm:$0xff]
  %v1141 = vld [vmem:[%s1121 + $0x98] sm:$0xff]
  %v1142 = vld [vmem:[%s1121 + $0xa0] sm:$0xff]
  %v1143 = vld [vmem:[%s1121 + $0xa8] sm:$0xff]
  %v1144 = vld [vmem:[%s1121 + $0xb0] sm:$0xff]
  %v1145 = vld [vmem:[%s1121 + $0xb8] sm:$0xff]
  %v1146 = vld [vmem:[%s1121 + $0xc0] sm:$0xff]
  %v1147 = vld [vmem:[%s1121 + $0xc8] sm:$0xff]
  %v1148 = vld [vmem:[%s1121 + $0xd0] sm:$0xff]
  %v1149 = vld [vmem:[%s1121 + $0xd8] sm:$0xff]
  %v1150 = vld [vmem:[%s1121 + $0xe0] sm:$0xff]
  %v1151 = vld [vmem:[%s1121 + $0xe8] sm:$0xff]
  %v1152 = vld [vmem:[%s1121 + $0xf0] sm:$0xff]
  %v1153 = vld [vmem:[%s1121 + $0xf8] sm:$0xff]
  %v1154 = vld [vmem:[%s1121 + $0x100] sm:$0xff]
  %v1155 = vld [vmem:[%s1121 + $0x108] sm:$0xff]
  %v1156 = vld [vmem:[%s1121 + $0x110] sm:$0xff]
  %v1157 = vld [vmem:[%s1121 + $0x118] sm:$0xff]
  %v1158 = vld [vmem:[%s1121 + $0x120] sm:$0xff]
  %v1159 = vld [vmem:[%s1121 + $0x128] sm:$0xff]
  %v1160 = vld [vmem:[%s1121 + $0x130] sm:$0xff]
  %v1161 = vld [vmem:[%s1121 + $0x138] sm:$0xff]
  %v1162 = vld [vmem:[%s1121 + $0x140] sm:$0xff]
  %v1163 = vld [vmem:[%s1121 + $0x148] sm:$0xff]
  %v1164 = vld [vmem:[%s1121 + $0x150] sm:$0xff]
  %v1165 = vld [vmem:[%s1121 + $0x158] sm:$0xff]
  %v1166 = vld [vmem:[%s1121 + $0x160] sm:$0xff]
  %v1167 = vld [vmem:[%s1121 + $0x168] sm:$0xff]
  %v1168 = vld [vmem:[%s1121 + $0x170] sm:$0xff]
  %v1169 = vld [vmem:[%s1121 + $0x178] sm:$0xff]
  %v1174 = vrot.slane %v1117, 1
  %v1175 = vrot.slane %v1119, 1
  %v1176 = vsel %vm666, %v1174, %v1175
  %v1177 = vrot.slane %v1118, 1
  %v1178 = vrot.slane %v1120, 1
  %v1179 = vsel %vm666, %v1177, %v1178
  %vm1182 = vcmask 523264
  %v1183 = vsel %vm1182, %v1179, 0
  %v1185 = vsel %vm1182, %v1178, 0
  %1187 = vmatprep.subr.mxu0 %v1153
  %1188 = vmatpush1.msra.mxu0 %v1152
  %1189 = vmatprep.subr.mxu0 %v1151
  %1190 = vmatpush1.msra.mxu0 %v1150
  %1191 = vmatprep.subr.mxu0 %v1149
  %1192 = vmatpush1.msra.mxu0 %v1148
  %1193 = vmatprep.subr.mxu0 %v1147
  %1194 = vmatpush1.msra.mxu0 %v1146
  %1195 = vmatprep.subr.mxu0 %v1145
  %1196 = vmatpush1.msra.mxu0 %v1144
  %1197 = vmatprep.subr.mxu0 %v1143
  %1198 = vmatpush1.msra.mxu0 %v1142
  %1199 = vmatprep.subr.mxu0 %v1141
  %1200 = vmatpush1.msra.mxu0 %v1140
  %1201 = vmatprep.subr.mxu0 %v1139
  %1202 = vmatpush1.msra.mxu0 %v1138
  %1203 = vmatprep.subr.mxu0 %v1137
  %1204 = vmatpush1.msra.mxu0 %v1136
  %1205 = vmatprep.subr.mxu0 %v1135
  %1206 = vmatpush1.msra.mxu0 %v1134
  %1207 = vmatprep.subr.mxu0 %v1133
  %1208 = vmatpush1.msra.mxu0 %v1132
  %1209 = vmatprep.subr.mxu0 %v1131
  %1210 = vmatpush1.msra.mxu0 %v1130
  %1211 = vmatprep.subr.mxu0 %v1129
  %1212 = vmatpush1.msra.mxu0 %v1128
  %1213 = vmatprep.subr.mxu0 %v1127
  %1214 = vmatpush1.msra.mxu0 %v1126
  %1215 = vmatprep.subr.mxu0 %v1125
  %1216 = vmatpush1.msra.mxu0 %v1124
  %1217 = vmatprep.subr.mxu0 %v1123
  %1218 = vmatpush1.msra.mxu0 %v1122
  %1219 = vmatprep.subr.mxu0 0.0
  %1220 = vmatpush2.msra.mxu0 0.0
  %1221 = vmatprep.subr.mxu0 0.0
  %1222 = vmatpush2.msra.mxu0 0.0
  %1223 = vmatprep.subr.mxu0 0.0
  %1224 = vmatpush2.msra.mxu0 0.0
  %1225 = vmatprep.subr.mxu0 0.0
  %1226 = vmatpush2.msra.mxu0 0.0
  %1227 = vmatprep.subr.mxu0 0.0
  %1228 = vmatpush2.msra.mxu0 0.0
  %1229 = vmatprep.subr.mxu0 0.0
  %1230 = vmatpush2.msra.mxu0 0.0
  %1231 = vmatprep.subr.mxu0 0.0
  %1232 = vmatpush2.msra.mxu0 0.0
  %1233 = vmatprep.subr.mxu0 0.0
  %1234 = vmatpush2.msra.mxu0 0.0
  %1235 = vmatprep.subr.mxu0 %v1169
  %1236 = vmatpush2.msra.mxu0 %v1168
  %1237 = vmatprep.subr.mxu0 %v1167
  %1238 = vmatpush2.msra.mxu0 %v1166
  %1239 = vmatprep.subr.mxu0 %v1165
  %1240 = vmatpush2.msra.mxu0 %v1164
  %1241 = vmatprep.subr.mxu0 %v1163
  %1242 = vmatpush2.msra.mxu0 %v1162
  %1243 = vmatprep.subr.mxu0 %v1161
  %1244 = vmatpush2.msra.mxu0 %v1160
  %1245 = vmatprep.subr.mxu0 %v1159
  %1246 = vmatpush2.msra.mxu0 %v1158
  %1247 = vmatprep.subr.mxu0 %v1157
  %1248 = vmatpush2.msra.mxu0 %v1156
  %1249 = vmatprep.subr.mxu0 %v1155
  %1250 = vmatpush2.msra.mxu0 %v1154
  %1251 = vmatprep.mubr.f32.mxu0 %v1183
  %1252 = vmatmul.mubr.f32.gmra.mxu0 %v1176
  %v1253 = vpop.f32.mrf.mxu0
  %v1254 = vadd.f32 0.0, %v1253
  %v1255 = vpop.f32.mrf.mxu0
  %v1256 = vadd.f32 0.0, %v1255
  %1257 = vmatprep.mubr.f32.mxu0 %v1185
  %1258 = vmatmul.mubr.f32.gmra.mxu0 %v1175
  %v1259 = vpop.f32.mrf.mxu0
  %v1260 = vadd.f32 0.0, %v1259
  %v1261 = vpop.f32.mrf.mxu0
  %v1262 = vadd.f32 0.0, %v1261
  %1263 = vdwg.mxu0
  %v1265 = vsel %vm1182, %v1066, 0
  %v1268 = vsel %vm1182, %v1068, 0
  %1270 = vmatprep.subr.mxu0 %v1100
  %1271 = vmatpush1.msra.mxu0 %v1099
  %1272 = vmatprep.subr.mxu0 %v1098
  %1273 = vmatpush1.msra.mxu0 %v1097
  %1274 = vmatprep.subr.mxu0 %v1096
  %1275 = vmatpush1.msra.mxu0 %v1095
  %1276 = vmatprep.subr.mxu0 %v1094
  %1277 = vmatpush1.msra.mxu0 %v1093
  %1278 = vmatprep.subr.mxu0 %v1092
  %1279 = vmatpush1.msra.mxu0 %v1091
  %1280 = vmatprep.subr.mxu0 %v1090
  %1281 = vmatpush1.msra.mxu0 %v1089
  %1282 = vmatprep.subr.mxu0 %v1088
  %1283 = vmatpush1.msra.mxu0 %v1087
  %1284 = vmatprep.subr.mxu0 %v1086
  %1285 = vmatpush1.msra.mxu0 %v1085
  %1286 = vmatprep.subr.mxu0 %v1084
  %1287 = vmatpush1.msra.mxu0 %v1083
  %1288 = vmatprep.subr.mxu0 %v1082
  %1289 = vmatpush1.msra.mxu0 %v1081
  %1290 = vmatprep.subr.mxu0 %v1080
  %1291 = vmatpush1.msra.mxu0 %v1079
  %1292 = vmatprep.subr.mxu0 %v1078
  %1293 = vmatpush1.msra.mxu0 %v1077
  %1294 = vmatprep.subr.mxu0 %v1076
  %1295 = vmatpush1.msra.mxu0 %v1075
  %1296 = vmatprep.subr.mxu0 %v1074
  %1297 = vmatpush1.msra.mxu0 %v1073
  %1298 = vmatprep.subr.mxu0 %v1072
  %1299 = vmatpush1.msra.mxu0 %v1071
  %1300 = vmatprep.subr.mxu0 %v1070
  %1301 = vmatpush1.msra.mxu0 %v1069
  %1302 = vmatprep.subr.mxu0 0.0
  %1303 = vmatpush2.msra.mxu0 0.0
  %1304 = vmatprep.subr.mxu0 0.0
  %1305 = vmatpush2.msra.mxu0 0.0
  %1306 = vmatprep.subr.mxu0 0.0
  %1307 = vmatpush2.msra.mxu0 0.0
  %1308 = vmatprep.subr.mxu0 0.0
  %1309 = vmatpush2.msra.mxu0 0.0
  %1310 = vmatprep.subr.mxu0 0.0
  %1311 = vmatpush2.msra.mxu0 0.0
  %1312 = vmatprep.subr.mxu0 0.0
  %1313 = vmatpush2.msra.mxu0 0.0
  %1314 = vmatprep.subr.mxu0 0.0
  %1315 = vmatpush2.msra.mxu0 0.0
  %1316 = vmatprep.subr.mxu0 0.0
  %1317 = vmatpush2.msra.mxu0 0.0
  %1318 = vmatprep.subr.mxu0 %v1116
  %1319 = vmatpush2.msra.mxu0 %v1115
  %1320 = vmatprep.subr.mxu0 %v1114
  %1321 = vmatpush2.msra.mxu0 %v1113
  %1322 = vmatprep.subr.mxu0 %v1112
  %1323 = vmatpush2.msra.mxu0 %v1111
  %1324 = vmatprep.subr.mxu0 %v1110
  %1325 = vmatpush2.msra.mxu0 %v1109
  %1326 = vmatprep.subr.mxu0 %v1108
  %1327 = vmatpush2.msra.mxu0 %v1107
  %1328 = vmatprep.subr.mxu0 %v1106
  %1329 = vmatpush2.msra.mxu0 %v1105
  %1330 = vmatprep.subr.mxu0 %v1104
  %1331 = vmatpush2.msra.mxu0 %v1103
  %1332 = vmatprep.subr.mxu0 %v1102
  %1333 = vmatpush2.msra.mxu0 %v1101
  %1334 = vmatprep.mubr.f32.mxu0 %v1265
  %1335 = vmatmul.mubr.f32.gmra.mxu0 %v1065
  %v1336 = vpop.f32.mrf.mxu0
  %v1337 = vadd.f32 %v1254, %v1336
  %v1338 = vpop.f32.mrf.mxu0
  %v1339 = vadd.f32 %v1256, %v1338
  %1340 = vmatprep.mubr.f32.mxu0 %v1268
  %1341 = vmatmul.mubr.f32.gmra.mxu0 %v1067
  %v1342 = vpop.f32.mrf.mxu0
  %v1343 = vadd.f32 %v1260, %v1342
  %v1344 = vpop.f32.mrf.mxu0
  %v1345 = vadd.f32 %v1262, %v1344
  %1346 = vdwg.mxu0
  %v1347 = vld [vmem:[#allocation5] sm:$0xfc]
  %v1348 = vld [vmem:[#allocation5 + $0x8] sm:$0xfc]
  %v1349 = vld [vmem:[#allocation5 + $0x10] sm:$0xf]
  %v1350 = vld [vmem:[#allocation5 + $0x18] sm:$0xf]
  %s1351 = scalar_lea.vmem %s5, 768
  %v1352 = vld [vmem:[%s1351] sm:$0xff]
  %v1353 = vld [vmem:[%s1351 + $0x8] sm:$0xff]
  %v1354 = vld [vmem:[%s1351 + $0x10] sm:$0xff]
  %v1355 = vld [vmem:[%s1351 + $0x18] sm:$0xff]
  %v1356 = vld [vmem:[%s1351 + $0x20] sm:$0xff]
  %v1357 = vld [vmem:[%s1351 + $0x28] sm:$0xff]
  %v1358 = vld [vmem:[%s1351 + $0x30] sm:$0xff]
  %v1359 = vld [vmem:[%s1351 + $0x38] sm:$0xff]
  %v1360 = vld [vmem:[%s1351 + $0x40] sm:$0xff]
  %v1361 = vld [vmem:[%s1351 + $0x48] sm:$0xff]
  %v1362 = vld [vmem:[%s1351 + $0x50] sm:$0xff]
  %v1363 = vld [vmem:[%s1351 + $0x58] sm:$0xff]
  %v1364 = vld [vmem:[%s1351 + $0x60] sm:$0xff]
  %v1365 = vld [vmem:[%s1351 + $0x68] sm:$0xff]
  %v1366 = vld [vmem:[%s1351 + $0x70] sm:$0xff]
  %v1367 = vld [vmem:[%s1351 + $0x78] sm:$0xff]
  %v1368 = vld [vmem:[%s1351 + $0x80] sm:$0xff]
  %v1369 = vld [vmem:[%s1351 + $0x88] sm:$0xff]
  %v1370 = vld [vmem:[%s1351 + $0x90] sm:$0xff]
  %v1371 = vld [vmem:[%s1351 + $0x98] sm:$0xff]
  %v1372 = vld [vmem:[%s1351 + $0xa0] sm:$0xff]
  %v1373 = vld [vmem:[%s1351 + $0xa8] sm:$0xff]
  %v1374 = vld [vmem:[%s1351 + $0xb0] sm:$0xff]
  %v1375 = vld [vmem:[%s1351 + $0xb8] sm:$0xff]
  %v1376 = vld [vmem:[%s1351 + $0xc0] sm:$0xff]
  %v1377 = vld [vmem:[%s1351 + $0xc8] sm:$0xff]
  %v1378 = vld [vmem:[%s1351 + $0xd0] sm:$0xff]
  %v1379 = vld [vmem:[%s1351 + $0xd8] sm:$0xff]
  %v1380 = vld [vmem:[%s1351 + $0xe0] sm:$0xff]
  %v1381 = vld [vmem:[%s1351 + $0xe8] sm:$0xff]
  %v1382 = vld [vmem:[%s1351 + $0xf0] sm:$0xff]
  %v1383 = vld [vmem:[%s1351 + $0xf8] sm:$0xff]
  %v1384 = vld [vmem:[%s1351 + $0x100] sm:$0xff]
  %v1385 = vld [vmem:[%s1351 + $0x108] sm:$0xff]
  %v1386 = vld [vmem:[%s1351 + $0x110] sm:$0xff]
  %v1387 = vld [vmem:[%s1351 + $0x118] sm:$0xff]
  %v1388 = vld [vmem:[%s1351 + $0x120] sm:$0xff]
  %v1389 = vld [vmem:[%s1351 + $0x128] sm:$0xff]
  %v1390 = vld [vmem:[%s1351 + $0x130] sm:$0xff]
  %v1391 = vld [vmem:[%s1351 + $0x138] sm:$0xff]
  %v1392 = vld [vmem:[%s1351 + $0x140] sm:$0xff]
  %v1393 = vld [vmem:[%s1351 + $0x148] sm:$0xff]
  %v1394 = vld [vmem:[%s1351 + $0x150] sm:$0xff]
  %v1395 = vld [vmem:[%s1351 + $0x158] sm:$0xff]
  %v1396 = vld [vmem:[%s1351 + $0x160] sm:$0xff]
  %v1397 = vld [vmem:[%s1351 + $0x168] sm:$0xff]
  %v1398 = vld [vmem:[%s1351 + $0x170] sm:$0xff]
  %v1399 = vld [vmem:[%s1351 + $0x178] sm:$0xff]
  %v1404 = vrot.slane %v1347, 2
  %v1405 = vrot.slane %v1349, 2
  %v1406 = vsel %vm909, %v1404, %v1405
  %v1407 = vrot.slane %v1348, 2
  %v1408 = vrot.slane %v1350, 2
  %v1409 = vsel %vm909, %v1407, %v1408
  %v1412 = vsel %vm1182, %v1409, 0
  %v1414 = vsel %vm1182, %v1408, 0
  %1416 = vmatprep.subr.mxu0 %v1383
  %1417 = vmatpush1.msra.mxu0 %v1382
  %1418 = vmatprep.subr.mxu0 %v1381
  %1419 = vmatpush1.msra.mxu0 %v1380
  %1420 = vmatprep.subr.mxu0 %v1379
  %1421 = vmatpush1.msra.mxu0 %v1378
  %1422 = vmatprep.subr.mxu0 %v1377
  %1423 = vmatpush1.msra.mxu0 %v1376
  %1424 = vmatprep.subr.mxu0 %v1375
  %1425 = vmatpush1.msra.mxu0 %v1374
  %1426 = vmatprep.subr.mxu0 %v1373
  %1427 = vmatpush1.msra.mxu0 %v1372
  %1428 = vmatprep.subr.mxu0 %v1371
  %1429 = vmatpush1.msra.mxu0 %v1370
  %1430 = vmatprep.subr.mxu0 %v1369
  %1431 = vmatpush1.msra.mxu0 %v1368
  %1432 = vmatprep.subr.mxu0 %v1367
  %1433 = vmatpush1.msra.mxu0 %v1366
  %1434 = vmatprep.subr.mxu0 %v1365
  %1435 = vmatpush1.msra.mxu0 %v1364
  %1436 = vmatprep.subr.mxu0 %v1363
  %1437 = vmatpush1.msra.mxu0 %v1362
  %1438 = vmatprep.subr.mxu0 %v1361
  %1439 = vmatpush1.msra.mxu0 %v1360
  %1440 = vmatprep.subr.mxu0 %v1359
  %1441 = vmatpush1.msra.mxu0 %v1358
  %1442 = vmatprep.subr.mxu0 %v1357
  %1443 = vmatpush1.msra.mxu0 %v1356
  %1444 = vmatprep.subr.mxu0 %v1355
  %1445 = vmatpush1.msra.mxu0 %v1354
  %1446 = vmatprep.subr.mxu0 %v1353
  %1447 = vmatpush1.msra.mxu0 %v1352
  %1448 = vmatprep.subr.mxu0 0.0
  %1449 = vmatpush2.msra.mxu0 0.0
  %1450 = vmatprep.subr.mxu0 0.0
  %1451 = vmatpush2.msra.mxu0 0.0
  %1452 = vmatprep.subr.mxu0 0.0
  %1453 = vmatpush2.msra.mxu0 0.0
  %1454 = vmatprep.subr.mxu0 0.0
  %1455 = vmatpush2.msra.mxu0 0.0
  %1456 = vmatprep.subr.mxu0 0.0
  %1457 = vmatpush2.msra.mxu0 0.0
  %1458 = vmatprep.subr.mxu0 0.0
  %1459 = vmatpush2.msra.mxu0 0.0
  %1460 = vmatprep.subr.mxu0 0.0
  %1461 = vmatpush2.msra.mxu0 0.0
  %1462 = vmatprep.subr.mxu0 0.0
  %1463 = vmatpush2.msra.mxu0 0.0
  %1464 = vmatprep.subr.mxu0 %v1399
  %1465 = vmatpush2.msra.mxu0 %v1398
  %1466 = vmatprep.subr.mxu0 %v1397
  %1467 = vmatpush2.msra.mxu0 %v1396
  %1468 = vmatprep.subr.mxu0 %v1395
  %1469 = vmatpush2.msra.mxu0 %v1394
  %1470 = vmatprep.subr.mxu0 %v1393
  %1471 = vmatpush2.msra.mxu0 %v1392
  %1472 = vmatprep.subr.mxu0 %v1391
  %1473 = vmatpush2.msra.mxu0 %v1390
  %1474 = vmatprep.subr.mxu0 %v1389
  %1475 = vmatpush2.msra.mxu0 %v1388
  %1476 = vmatprep.subr.mxu0 %v1387
  %1477 = vmatpush2.msra.mxu0 %v1386
  %1478 = vmatprep.subr.mxu0 %v1385
  %1479 = vmatpush2.msra.mxu0 %v1384
  %1480 = vmatprep.mubr.f32.mxu0 %v1412
  %1481 = vmatmul.mubr.f32.gmra.mxu0 %v1406
  %v1482 = vpop.f32.mrf.mxu0
  %v1483 = vadd.f32 0.0, %v1482
  %v1484 = vpop.f32.mrf.mxu0
  %v1485 = vadd.f32 0.0, %v1484
  %1486 = vmatprep.mubr.f32.mxu0 %v1414
  %1487 = vmatmul.mubr.f32.gmra.mxu0 %v1405
  %v1488 = vpop.f32.mrf.mxu0
  %v1489 = vadd.f32 0.0, %v1488
  %v1490 = vpop.f32.mrf.mxu0
  %v1491 = vadd.f32 0.0, %v1490
  %1492 = vdwg.mxu0
  %v1493 = vadd.f32 %v1337, %v1483
  %v1494 = vadd.f32 %v1339, %v1485
  %v1495 = vadd.f32 %v1343, %v1489
  %v1496 = vadd.f32 %v1345, %v1491
  %v1497 = vmax.f32 %v1493, %v1494
  %v1498 = vmax.f32 %v1495, %v1496
  %1499 = vst [vmem:[#allocation2] sm:$0xff] %v1497
  %1500 = vst [vmem:[#allocation2 + $0x8] sm:$0x3] %v1498
  %v1502 = vlaneseq
  %v1503 = vshrl.u32 %v1502, 7
  %v1504 = vsub.s32 0, %v1503
  %v1505 = vrot.slane %v1064, %v1504
  %v1507 = vld [vmem:[#allocation2] ss:$2 sm:$0x3]
  %v1508 = vld [vmem:[%s530] ss:$2 sm:$0x3]
  %v1509 = vmax.f32 %v1507, %v1508
  %v1510 = vadd.f32 %v1509, %v1505
  %v1511 = vmax.f32 %v1510, 0.0
  %1512 = vst [vmem:[%s7] sm:$0x3] %v1511
  %s1513 = scalar_lea.vmem [#allocation2], 6
  %v1514 = vld [vmem:[%s1513] ss:$2 sm:$0x3]
  %s1515 = scalar_lea.vmem [#allocation2], 7
  %v1516 = vld [vmem:[%s1515] ss:$2 sm:$0x3]
  %v1517 = vmax.f32 %v1514, %v1516
  %v1518 = vadd.f32 %v1517, %v1505
  %v1519 = vmax.f32 %v1518, 0.0
  %s1520 = scalar_lea.vmem %s7, 2
  %1521 = vst [vmem:[%s1520] sm:$0x3] %v1519
  // Predicated region
  $region30: #{cnn_encoder_forward.1} parent=0 // pred_check
    _
  $region31: #{cnn_encoder_forward.1} parent=0 // pred_check_branch
    %1523 = sbr.rel (0) target = $region33
  $region32: #{cnn_encoder_forward.1} parent=0 // pred_region
    _
  $region33: #{cnn_encoder_forward.1} parent=0 // pred_fallthru
    _
  // Predicated region
  $region34: #{cnn_encoder_forward.1} parent=0 // pred_check
    _
  $region35: #{cnn_encoder_forward.1} parent=0 // pred_check_branch
    %1525 = sbr.rel (0) target = $region37
  $region36: #{cnn_encoder_forward.1} parent=0 // pred_region
    _
  $region37: #{cnn_encoder_forward.1} parent=0 // pred_fallthru
    _

</llo_original>
